<compile_context>
chip_gen: v6e
topology: v6e:2x2x1
jax: 0.10.0
libtpu: 0.0.40
codegen_flags: <defaults>
</compile_context>

<pallas_src>
import math
from functools import partial

import jax
import jax.numpy as jnp
from jax import lax
from jax.experimental import pallas as pl
from jax.experimental.pallas import tpu as pltpu


# --------------------------------------------------------------------------
# Pallas kernel 1: fused RPN head
#   t   = relu(patches @ W3 + b3)              (3x3 conv via im2col rows)
#   out = t @ [Wc | Wb | 0] + [bc | bb | 0]    (single lane-dense (TM,128) store)
# --------------------------------------------------------------------------
def _rpn_head_kernel(x_ref, w3_ref, b3_ref, wcb_ref, bcb_ref, out_ref):
    # x_ref:   (TM, P)   bf16 im2col rows (P = 9*Cin)
    # w3_ref:  (P, C)    bf16
    # b3_ref:  (1, C)    f32
    # wcb_ref: (C, OUT)  bf16 fused [cls | bbox] weights, zero-padded to 128 lanes
    # bcb_ref: (1, OUT)  f32
    # out_ref: (TM, OUT) f32
    t = jnp.dot(x_ref[...], w3_ref[...], preferred_element_type=jnp.float32)
    t = jnp.maximum(t + b3_ref[...], 0.0)                       # bias + ReLU in f32
    out_ref[...] = (jnp.dot(t.astype(jnp.bfloat16), wcb_ref[...],
                            preferred_element_type=jnp.float32)
                    + bcb_ref[...])


def rpn_head_pallas(patches, w3, b3, wcb, bcb, *, tile_m=256):
    # patches: (M_pad, P) bf16 with M_pad % tile_m == 0
    M_pad, P = patches.shape
    C = w3.shape[1]
    OUT = wcb.shape[1]
    return pl.pallas_call(
        _rpn_head_kernel,
        out_shape=jax.ShapeDtypeStruct((M_pad, OUT), jnp.float32),
        grid_spec=pltpu.PrefetchScalarGridSpec(
            num_scalar_prefetch=0,
            grid=(M_pad // tile_m,),
            in_specs=[
                pl.BlockSpec((tile_m, P), lambda i: (i, 0)),
                pl.BlockSpec((P, C), lambda i: (0, 0)),
                pl.BlockSpec((1, C), lambda i: (0, 0)),
                pl.BlockSpec((C, OUT), lambda i: (0, 0)),
                pl.BlockSpec((1, OUT), lambda i: (0, 0)),
            ],
            out_specs=pl.BlockSpec((tile_m, OUT), lambda i: (i, 0)),
        ),
        compiler_params=pltpu.CompilerParams(
            dimension_semantics=("parallel",),
            vmem_limit_bytes=32 * 1024 * 1024),
    )(patches, w3, b3, wcb, bcb)


# --------------------------------------------------------------------------
# Pallas kernel 2: sigmoid + BoxCoder.decode (weights=(1,1,1,1)) + clip.
# Runs only on the per-image top-k (pre_nms) candidates, lane-padded to 128s.
# --------------------------------------------------------------------------
def _decode_kernel(img_sizes_ref, scores_ref, deltas_ref, anchors_ref,
                   probs_ref, boxes_ref, *, bbox_clip):
    n = pl.program_id(0)
    img_w = img_sizes_ref[n, 0].astype(jnp.float32)
    img_h = img_sizes_ref[n, 1].astype(jnp.float32)

    # numerically-safe sigmoid; divide replaced by EUP approx reciprocal
    s = scores_ref[0]                                  # (1, Kp) logits
    z = jnp.exp(-jnp.abs(s))
    probs_ref[0] = (jnp.where(s >= 0.0, 1.0, z)
                    * pl.reciprocal(1.0 + z, approx=True))

    a = anchors_ref[0]                                 # (4, Kp)  [x1, y1, x2, y2]
    d = deltas_ref[0]                                  # (4, Kp)  [dx, dy, dw, dh]

    aw = a[2:3] - a[0:1]
    ah = a[3:4] - a[1:2]
    acx = a[0:1] + 0.5 * aw
    acy = a[1:2] + 0.5 * ah

    dx = d[0:1]
    dy = d[1:2]
    dw = jnp.minimum(d[2:3], bbox_clip)
    dh = jnp.minimum(d[3:4], bbox_clip)

    pcx = dx * aw + acx
    pcy = dy * ah + acy
    pw = jnp.exp(dw) * aw
    ph = jnp.exp(dh) * ah

    # direct per-coordinate row stores (no concatenate / sublane relayout)
    boxes_ref[0, 0:1, :] = jnp.clip(pcx - 0.5 * pw, 0.0, img_w)
    boxes_ref[0, 1:2, :] = jnp.clip(pcy - 0.5 * ph, 0.0, img_h)
    boxes_ref[0, 2:3, :] = jnp.clip(pcx + 0.5 * pw, 0.0, img_w)
    boxes_ref[0, 3:4, :] = jnp.clip(pcy + 0.5 * ph, 0.0, img_h)


def decode_pallas(img_sizes, scores, deltas, anchors, bbox_clip):
    # img_sizes: (N, 2) int32 [w, h] (scalar-prefetched to SMEM)
    # scores: (N, 1, Kp) logits;  deltas/anchors: (N, 4, Kp)
    N, _, Kp = scores.shape
    out_shape = (jax.ShapeDtypeStruct((N, 1, Kp), jnp.float32),
                 jax.ShapeDtypeStruct((N, 4, Kp), jnp.float32))
    return pl.pallas_call(
        partial(_decode_kernel, bbox_clip=bbox_clip),
        out_shape=out_shape,
        grid_spec=pltpu.PrefetchScalarGridSpec(
            num_scalar_prefetch=1,
            grid=(N,),
            in_specs=[
                pl.BlockSpec((1, 1, Kp), lambda n, im: (n, 0, 0)),
                pl.BlockSpec((1, 4, Kp), lambda n, im: (n, 0, 0)),
                pl.BlockSpec((1, 4, Kp), lambda n, im: (n, 0, 0)),
            ],
            out_specs=[
                pl.BlockSpec((1, 1, Kp), lambda n, im: (n, 0, 0)),
                pl.BlockSpec((1, 4, Kp), lambda n, im: (n, 0, 0)),
            ]),
        compiler_params=pltpu.CompilerParams(
            dimension_semantics=("parallel",)),
    )(img_sizes, scores, deltas, anchors)


# --------------------------------------------------------------------------
# Plain-JAX glue: anchors, im2col, fixed-size masked NMS
# --------------------------------------------------------------------------
def generate_anchors(stride, scales, ratios, H, W):
    scales = jnp.asarray(scales, jnp.float32)
    ratios = jnp.asarray(ratios, jnp.float32)
    h_ratios = jnp.sqrt(ratios)
    w_ratios = 1.0 / h_ratios
    ws = (w_ratios[:, None] * scales[None, :]).reshape(-1)
    hs = (h_ratios[:, None] * scales[None, :]).reshape(-1)
    base = jnp.round(jnp.stack([-ws, -hs, ws, hs], axis=1) / 2.0)     # (A, 4)
    shifts_x = jnp.arange(W, dtype=jnp.float32) * stride
    shifts_y = jnp.arange(H, dtype=jnp.float32) * stride
    sy, sx = jnp.meshgrid(shifts_y, shifts_x, indexing="ij")
    shifts = jnp.stack([sx.reshape(-1), sy.reshape(-1),
                        sx.reshape(-1), sy.reshape(-1)], axis=1)      # (HW, 4)
    anchors = (shifts[:, None, :] + base[None, :, :]).reshape(-1, 4)  # (HW*A, 4)
    return anchors


def im2col_3x3(x_nchw):
    # NCHW -> NHWC -> zero-pad -> (N, H*W, 9*Cin), patch order (kh, kw, cin)
    # TODO(synk): at production Cin this 9x HBM blowup should be replaced by an
    #             in-kernel halo 3x3 conv (manual DMA of padded NHWC row tiles).
    N, Cin, H, W = x_nchw.shape
    x = jnp.transpose(x_nchw, (0, 2, 3, 1))
    xp = jnp.pad(x, ((0, 0), (1, 1), (1, 1), (0, 0)))
    cols = []
    for dy in range(3):
        for dx in range(3):
            cols.append(xp[:, dy:dy + H, dx:dx + W, :])
    return jnp.concatenate(cols, axis=-1).reshape(N, H * W, 9 * Cin)


def greedy_nms_fixed(boxes, scores, valid, *, iou_thresh, max_out):
    # boxes (Kp, 4) already sorted by descending score; valid marks real,
    # non-small boxes. Returns fixed-size, score-ordered kept set + mask.
    M = boxes.shape[0]
    x1, y1, x2, y2 = boxes[:, 0], boxes[:, 1], boxes[:, 2], boxes[:, 3]
    areas = jnp.maximum(x2 - x1, 0.0) * jnp.maximum(y2 - y1, 0.0)
    idxs = jnp.arange(M)

    def body(i, keep):
        xx1 = jnp.maximum(x1[i], x1)
        yy1 = jnp.maximum(y1[i], y1)
        xx2 = jnp.minimum(x2[i], x2)
        yy2 = jnp.minimum(y2[i], y2)
        inter = jnp.maximum(xx2 - xx1, 0.0) * jnp.maximum(yy2 - yy1, 0.0)
        iou = inter / jnp.maximum(areas[i] + areas - inter, 1e-9)
        suppressed = jnp.any((iou > iou_thresh) & keep & (idxs < i))
        return keep.at[i].set(keep[i] & jnp.logical_not(suppressed))

    keep = lax.fori_loop(0, M, body, valid)
    order = jnp.argsort(jnp.logical_not(keep).astype(jnp.int32), stable=True)
    sel = order[:max_out]
    out_valid = keep[sel]
    out_boxes = jnp.where(out_valid[:, None], boxes[sel], 0.0)
    out_scores = jnp.where(out_valid, scores[sel], 0.0)
    return out_boxes, out_scores, out_valid


# --------------------------------------------------------------------------
# RPN forward (inference)
# --------------------------------------------------------------------------
class RPNConfig:
    ANCHOR_STRIDE = 16
    ANCHOR_SIZES = (32.0, 64.0, 128.0)
    ASPECT_RATIOS = (0.5, 1.0, 2.0)
    NUM_CHANNELS = 8
    NMS_THRESH = 0.7
    MIN_SIZE = 0.0
    PRE_NMS_TOP_N_TEST = 200
    POST_NMS_TOP_N_TEST = 50
    BBOX_XFORM_CLIP = math.log(1000.0 / 16.0)


@partial(jax.jit, static_argnames=("cfg",))
def _rpn_forward_core(features_nchw, params, img_sizes, *, cfg):
    N, Cin, H, W = features_nchw.shape
    A = len(cfg.ANCHOR_SIZES) * len(cfg.ASPECT_RATIOS)
    HW = H * W
    K = HW * A
    C = params["w3"].shape[1]

    # --- head: im2col (bf16) + fused lane-dense Pallas matmul head ---
    patches = im2col_3x3(features_nchw.astype(jnp.bfloat16))     # (N, HW, 9*Cin)
    P = patches.shape[-1]
    M = N * HW
    TM = 256
    M_pad = ((M + TM - 1) // TM) * TM
    patches = patches.reshape(M, P)
    if M_pad != M:
        patches = jnp.pad(patches, ((0, M_pad - M), (0, 0)))

    OUT = ((5 * A + 127) // 128) * 128                           # lane-dense output
    wcb = jnp.zeros((C, OUT), jnp.float32)
    wcb = wcb.at[:, :A].set(params["wc"]).at[:, A:5 * A].set(params["wb"])
    bcb = jnp.zeros((1, OUT), jnp.float32)
    bcb = bcb.at[:, :A].set(params["bc"]).at[:, A:5 * A].set(params["bb"])

    head_out = rpn_head_pallas(
        patches, params["w3"].astype(jnp.bfloat16), params["b3"],
        wcb.astype(jnp.bfloat16), bcb, tile_m=TM)                # (M_pad, OUT) f32
    head_out = head_out[:M]

    logits_flat = head_out[:, :A].reshape(N, HW, A)              # (h,w,a) order
    breg_flat = head_out[:, A:5 * A].reshape(N, HW, A, 4)

    # module output convention: logits as NCHW (N, A, H, W)
    logits_nchw = jnp.transpose(logits_flat.reshape(N, H, W, A), (0, 3, 1, 2))

    # --- proposal generation: top-k on logits BEFORE decoding ---
    anchors = generate_anchors(cfg.ANCHOR_STRIDE, cfg.ANCHOR_SIZES,
                               cfg.ASPECT_RATIOS, H, W)          # (K, 4)
    obj_logits = logits_flat.reshape(N, K)
    deltas = breg_flat.reshape(N, K, 4)

    pre_nms = min(cfg.PRE_NMS_TOP_N_TEST, K)
    top_logits, topk_idx = lax.top_k(obj_logits, pre_nms)        # sorted desc
    sel_deltas = jnp.take_along_axis(deltas, topk_idx[:, :, None], axis=1)
    sel_anchors = anchors[topk_idx]                              # (N, pre, 4)

    Kp = ((pre_nms + 127) // 128) * 128                          # lane-pad
    pad = Kp - pre_nms
    top_logits = jnp.pad(top_logits, ((0, 0), (0, pad)), constant_values=-1e9)
    sel_deltas = jnp.pad(sel_deltas, ((0, 0), (0, pad), (0, 0)))
    sel_anchors = jnp.pad(sel_anchors, ((0, 0), (0, pad), (0, 0)))

    scores_in = top_logits.reshape(N, 1, Kp)
    deltas_in = jnp.transpose(sel_deltas, (0, 2, 1))             # (N, 4, Kp)
    anchors_in = jnp.transpose(sel_anchors, (0, 2, 1))           # (N, 4, Kp)

    probs, boxes = decode_pallas(img_sizes, scores_in, deltas_in, anchors_in,
                                 cfg.BBOX_XFORM_CLIP)
    probs = probs.reshape(N, Kp)
    boxes = jnp.transpose(boxes, (0, 2, 1))                      # (N, Kp, 4)

    ws = boxes[:, :, 2] - boxes[:, :, 0]
    hs = boxes[:, :, 3] - boxes[:, :, 1]
    valid = ((ws >= cfg.MIN_SIZE) & (hs >= cfg.MIN_SIZE)
             & (jnp.arange(Kp)[None, :] < pre_nms))

    post_nms = cfg.POST_NMS_TOP_N_TEST
    nms_fn = jax.vmap(lambda b, s, v: greedy_nms_fixed(
        b, s, v, iou_thresh=cfg.NMS_THRESH, max_out=post_nms))
    out_boxes, out_scores, out_valid = nms_fn(boxes, probs, valid)
    return out_boxes, out_scores, out_valid, logits_nchw


def rpn_forward(features_nchw, params, img_metas, cfg=RPNConfig):
    img_sizes = jnp.asarray(
        [list(m["img_shape"]) for m in img_metas], jnp.int32)    # (N, 2) [w, h]
    out_boxes, out_scores, out_valid, logits_nchw = _rpn_forward_core(
        features_nchw, params, img_sizes, cfg=cfg)
    # fixed-size padded proposals + validity mask (JAX needs static shapes;
    # the PyTorch module returns variable-length tensors)
    proposals = [{"boxes": out_boxes[n], "scores": out_scores[n],
                  "valid": out_valid[n]}
                 for n in range(features_nchw.shape[0])]
    loss = {}  # eval mode / targets=None
    return proposals, loss, logits_nchw


# --------------------------------------------------------------------------
# Deterministic parameter init (normal std=0.01, bias 0), mirroring __init__
# --------------------------------------------------------------------------
def init_params(key, in_channels, num_channels, num_anchors):
    k1, k2, k3 = jax.random.split(key, 3)
    w_conv = 0.01 * jax.random.normal(k1, (num_channels, in_channels, 3, 3),
                                      jnp.float32)                # (C, Cin, 3, 3)
    w_cls = 0.01 * jax.random.normal(k2, (num_anchors, num_channels, 1, 1),
                                     jnp.float32)
    w_box = 0.01 * jax.random.normal(k3, (4 * num_anchors, num_channels, 1, 1),
                                     jnp.float32)
    # (C, Cin, kh, kw) -> (kh, kw, Cin, C) -> (9*Cin, C); matches im2col order
    w3 = jnp.transpose(w_conv, (2, 3, 1, 0)).reshape(9 * in_channels, num_channels)
    wc = jnp.transpose(w_cls[:, :, 0, 0], (1, 0))                  # (C, A)
    wb = jnp.transpose(w_box[:, :, 0, 0], (1, 0))                  # (C, 4A)
    return {
        "w3": w3, "b3": jnp.zeros((1, num_channels), jnp.float32),
        "wc": wc, "bc": jnp.zeros((1, num_anchors), jnp.float32),
        "wb": wb, "bb": jnp.zeros((1, 4 * num_anchors), jnp.float32),
    }


if __name__ == "__main__":
    N, Cin, H, W = 2, 4, 16, 16
    cfg = RPNConfig
    A = len(cfg.ANCHOR_SIZES) * len(cfg.ASPECT_RATIOS)

    key = jax.random.PRNGKey(0)
    k_feat, k_par = jax.random.split(key)
    features = jax.random.normal(k_feat, (N, Cin, H, W), jnp.float32)  # NCHW input
    params = init_params(k_par, Cin, cfg.NUM_CHANNELS, A)

    img_metas = [{"img_shape": (W * cfg.ANCHOR_STRIDE, H * cfg.ANCHOR_STRIDE)}
                 for _ in range(N)]

    proposals, loss, logits = rpn_forward(features, params, img_metas, cfg)

    jax.block_until_ready(logits)
    for p in proposals:
        jax.block_until_ready(p["boxes"])
        jax.block_until_ready(p["valid"])

    assert logits.shape == (N, A, H, W)
    assert proposals[0]["boxes"].shape == (cfg.POST_NMS_TOP_N_TEST, 4)
    assert proposals[0]["valid"].shape == (cfg.POST_NMS_TOP_N_TEST,)
    print("KERNEL_OK")
</pallas_src>

<mosaic_0001>
module attributes {stable_mosaic.version = 11 : i64} {
  func.func @_rpn_head_kernel(%arg0: i32, %arg1: memref<256x36xbf16, #tpu.memory_space<vmem>>, %arg2: memref<36x8xbf16, #tpu.memory_space<vmem>>, %arg3: memref<1x8xf32, #tpu.memory_space<vmem>>, %arg4: memref<8x128xbf16, #tpu.memory_space<vmem>>, %arg5: memref<1x128xf32, #tpu.memory_space<vmem>>, %arg6: memref<256x128xf32, #tpu.memory_space<vmem>>) attributes {dimension_semantics = [#tpu.dimension_semantics<parallel>], iteration_bounds = array<i64: 2>, scalar_prefetch = 0 : i64, scratch_operands = 0 : i64, tpu.core_type = #tpu.core_type<tc>, window_params = [{transform_indices = @transform_0, window_bounds = array<i64: 256, 36>}, {pipeline_mode = #tpu.pipeline_mode<synchronous>, transform_indices = @transform_1, window_bounds = array<i64: 36, 8>}, {pipeline_mode = #tpu.pipeline_mode<synchronous>, transform_indices = @transform_2, window_bounds = array<i64: 1, 8>}, {pipeline_mode = #tpu.pipeline_mode<synchronous>, transform_indices = @transform_3, window_bounds = array<i64: 8, 128>}, {pipeline_mode = #tpu.pipeline_mode<synchronous>, transform_indices = @transform_4, window_bounds = array<i64: 1, 128>}, {transform_indices = @transform_5, window_bounds = array<i64: 256, 128>}]} {
    %c0 = arith.constant 0 : index
    %c0_0 = arith.constant 0 : index
    %0 = vector.load %arg1[%c0, %c0_0] : memref<256x36xbf16, #tpu.memory_space<vmem>>, vector<256x36xbf16>
    %c0_1 = arith.constant 0 : index
    %c0_2 = arith.constant 0 : index
    %1 = vector.load %arg2[%c0_1, %c0_2] : memref<36x8xbf16, #tpu.memory_space<vmem>>, vector<36x8xbf16>
    %cst = arith.constant dense<0.000000e+00> : vector<256x8xf32>
    %2 = tpu.matmul %0, %1, %cst {dimension_numbers = #tpu.dot_dimension_numbers<[1], [0], [0], [1], [0, 0, 1, 1], [], []>} : vector<256x36xbf16>, vector<36x8xbf16>, vector<256x8xf32> -> vector<256x8xf32>
    %c0_3 = arith.constant 0 : index
    %c0_4 = arith.constant 0 : index
    %3 = vector.load %arg3[%c0_3, %c0_4] : memref<1x8xf32, #tpu.memory_space<vmem>>, vector<1x8xf32>
    %4 = vector.broadcast %3 : vector<1x8xf32> to vector<256x8xf32>
    %5 = arith.addf %2, %4 : vector<256x8xf32>
    %cst_5 = arith.constant 0.000000e+00 : f32
    %6 = vector.broadcast %cst_5 : f32 to vector<256x8xf32>
    %7 = arith.maximumf %5, %6 : vector<256x8xf32>
    %8 = arith.truncf %7 : vector<256x8xf32> to vector<256x8xbf16>
    %c0_6 = arith.constant 0 : index
    %c0_7 = arith.constant 0 : index
    %9 = vector.load %arg4[%c0_6, %c0_7] : memref<8x128xbf16, #tpu.memory_space<vmem>>, vector<8x128xbf16>
    %cst_8 = arith.constant dense<0.000000e+00> : vector<256x128xf32>
    %10 = tpu.matmul %8, %9, %cst_8 {dimension_numbers = #tpu.dot_dimension_numbers<[1], [0], [0], [1], [0, 0, 1, 1], [], []>} : vector<256x8xbf16>, vector<8x128xbf16>, vector<256x128xf32> -> vector<256x128xf32>
    %c0_9 = arith.constant 0 : index
    %c0_10 = arith.constant 0 : index
    %11 = vector.load %arg5[%c0_9, %c0_10] : memref<1x128xf32, #tpu.memory_space<vmem>>, vector<1x128xf32>
    %12 = vector.broadcast %11 : vector<1x128xf32> to vector<256x128xf32>
    %13 = arith.addf %10, %12 : vector<256x128xf32>
    %c0_11 = arith.constant 0 : index
    %c0_12 = arith.constant 0 : index
    %14 = vector.load %arg6[%c0_11, %c0_12] : memref<256x128xf32, #tpu.memory_space<vmem>>, vector<256x128xf32>
    tpu.vector_store %arg6[%c0_11, %c0_12], %13 {strides = array<i32>} : memref<256x128xf32, #tpu.memory_space<vmem>>, vector<256x128xf32>,
    return
  }
  func.func @transform_0(%arg0: i32) -> (i32, i32) {
    %c0_i32 = arith.constant 0 : i32
    %c0_i32_0 = arith.constant 0 : i32
    return %arg0, %c0_i32 : i32, i32
  }
  func.func @transform_1(%arg0: i32) -> (i32, i32) {
    %c0_i32 = arith.constant 0 : i32
    %c0_i32_0 = arith.constant 0 : i32
    %c0_i32_1 = arith.constant 0 : i32
    return %c0_i32, %c0_i32_0 : i32, i32
  }
  func.func @transform_2(%arg0: i32) -> (i32, i32) {
    %c0_i32 = arith.constant 0 : i32
    %c0_i32_0 = arith.constant 0 : i32
    %c0_i32_1 = arith.constant 0 : i32
    return %c0_i32, %c0_i32_0 : i32, i32
  }
  func.func @transform_3(%arg0: i32) -> (i32, i32) {
    %c0_i32 = arith.constant 0 : i32
    %c0_i32_0 = arith.constant 0 : i32
    %c0_i32_1 = arith.constant 0 : i32
    return %c0_i32, %c0_i32_0 : i32, i32
  }
  func.func @transform_4(%arg0: i32) -> (i32, i32) {
    %c0_i32 = arith.constant 0 : i32
    %c0_i32_0 = arith.constant 0 : i32
    %c0_i32_1 = arith.constant 0 : i32
    return %c0_i32, %c0_i32_0 : i32, i32
  }
  func.func @transform_5(%arg0: i32) -> (i32, i32) {
    %c0_i32 = arith.constant 0 : i32
    %c0_i32_0 = arith.constant 0 : i32
    return %arg0, %c0_i32 : i32, i32
  }
}

module attributes {stable_mosaic.version = 11 : i64} {
  func.func @_decode_kernel(%arg0: i32, %arg1: memref<2x2xi32, #tpu.memory_space<smem>>, %arg2: memref<1x1x256xf32, #tpu.memory_space<vmem>>, %arg3: memref<1x4x256xf32, #tpu.memory_space<vmem>>, %arg4: memref<1x4x256xf32, #tpu.memory_space<vmem>>, %arg5: memref<1x1x256xf32, #tpu.memory_space<vmem>>, %arg6: memref<1x4x256xf32, #tpu.memory_space<vmem>>) attributes {dimension_semantics = [#tpu.dimension_semantics<parallel>], iteration_bounds = array<i64: 2>, scalar_prefetch = 1 : i64, scratch_operands = 0 : i64, tpu.core_type = #tpu.core_type<tc>, window_params = [{transform_indices = @transform_0, window_bounds = array<i64: 1, 1, 256>}, {transform_indices = @transform_1, window_bounds = array<i64: 1, 4, 256>}, {transform_indices = @transform_2, window_bounds = array<i64: 1, 4, 256>}, {transform_indices = @transform_3, window_bounds = array<i64: 1, 1, 256>}, {transform_indices = @transform_4, window_bounds = array<i64: 1, 4, 256>}]} {
    %0 = arith.index_cast %arg0 : i32 to index
    %c0 = arith.constant 0 : index
    %1 = memref.load %arg1[%0, %c0] : memref<2x2xi32, #tpu.memory_space<smem>>
    %2 = arith.sitofp %1 : i32 to f32
    %3 = arith.index_cast %arg0 : i32 to index
    %c1 = arith.constant 1 : index
    %4 = memref.load %arg1[%3, %c1] : memref<2x2xi32, #tpu.memory_space<smem>>
    %5 = arith.sitofp %4 : i32 to f32
    %c0_0 = arith.constant 0 : index
    %c0_1 = arith.constant 0 : index
    %c0_2 = arith.constant 0 : index
    %6 = vector.load %arg2[%c0_0, %c0_1, %c0_2] : memref<1x1x256xf32, #tpu.memory_space<vmem>>, vector<1x1x256xf32>
    %7 = vector.shape_cast %6 : vector<1x1x256xf32> to vector<1x256xf32>
    %8 = math.absf %7 : vector<1x256xf32>
    %cst = arith.constant 0.000000e+00 : f32
    %9 = vector.broadcast %cst : f32 to vector<1x256xf32>
    %10 = arith.subf %9, %8 : vector<1x256xf32>
    %11 = math.exp %10 : vector<1x256xf32>
    %cst_3 = arith.constant 0.000000e+00 : f32
    %12 = vector.broadcast %cst_3 : f32 to vector<1x256xf32>
    %13 = arith.cmpf oge, %7, %12 : vector<1x256xf32>
    %cst_4 = arith.constant 1.000000e+00 : f32
    %14 = vector.broadcast %cst_4 : f32 to vector<1x256xf32>
    %15 = arith.select %13, %14, %11 : vector<1x256xi1>, vector<1x256xf32>
    %cst_5 = arith.constant 1.000000e+00 : f32
    %16 = vector.broadcast %cst_5 : f32 to vector<1x256xf32>
    %17 = arith.addf %16, %11 : vector<1x256xf32>
    %18 = tpu.reciprocal %17 {approx = true} : vector<1x256xf32> -> vector<1x256xf32>
    %19 = arith.mulf %15, %18 : vector<1x256xf32>
    %c0_6 = arith.constant 0 : index
    %c0_7 = arith.constant 0 : index
    %c0_8 = arith.constant 0 : index
    %20 = vector.load %arg5[%c0_6, %c0_7, %c0_8] : memref<1x1x256xf32, #tpu.memory_space<vmem>>, vector<1x1x256xf32>
    %21 = vector.shape_cast %20 : vector<1x1x256xf32> to vector<1x256xf32>
    %22 = vector.shape_cast %19 : vector<1x256xf32> to vector<1x1x256xf32>
    tpu.vector_store %arg5[%c0_6, %c0_7, %c0_8], %22 {strides = array<i32>} : memref<1x1x256xf32, #tpu.memory_space<vmem>>, vector<1x1x256xf32>,
    %c0_9 = arith.constant 0 : index
    %c0_10 = arith.constant 0 : index
    %c0_11 = arith.constant 0 : index
    %23 = vector.load %arg4[%c0_9, %c0_10, %c0_11] : memref<1x4x256xf32, #tpu.memory_space<vmem>>, vector<1x4x256xf32>
    %24 = vector.shape_cast %23 : vector<1x4x256xf32> to vector<4x256xf32>
    %c0_12 = arith.constant 0 : index
    %c0_13 = arith.constant 0 : index
    %c0_14 = arith.constant 0 : index
    %25 = vector.load %arg3[%c0_12, %c0_13, %c0_14] : memref<1x4x256xf32, #tpu.memory_space<vmem>>, vector<1x4x256xf32>
    %26 = vector.shape_cast %25 : vector<1x4x256xf32> to vector<4x256xf32>
    %27 = vector.extract_strided_slice %24 {offsets = [2, 0], sizes = [1, 256], strides = [1, 1]} : vector<4x256xf32> to vector<1x256xf32>
    %28 = vector.extract_strided_slice %24 {offsets = [0, 0], sizes = [1, 256], strides = [1, 1]} : vector<4x256xf32> to vector<1x256xf32>
    %29 = arith.subf %27, %28 : vector<1x256xf32>
    %30 = vector.extract_strided_slice %24 {offsets = [3, 0], sizes = [1, 256], strides = [1, 1]} : vector<4x256xf32> to vector<1x256xf32>
    %31 = vector.extract_strided_slice %24 {offsets = [1, 0], sizes = [1, 256], strides = [1, 1]} : vector<4x256xf32> to vector<1x256xf32>
    %32 = arith.subf %30, %31 : vector<1x256xf32>
    %33 = vector.extract_strided_slice %24 {offsets = [0, 0], sizes = [1, 256], strides = [1, 1]} : vector<4x256xf32> to vector<1x256xf32>
    %cst_15 = arith.constant 5.000000e-01 : f32
    %34 = vector.broadcast %cst_15 : f32 to vector<1x256xf32>
    %35 = arith.mulf %34, %29 : vector<1x256xf32>
    %36 = arith.addf %33, %35 : vector<1x256xf32>
    %37 = vector.extract_strided_slice %24 {offsets = [1, 0], sizes = [1, 256], strides = [1, 1]} : vector<4x256xf32> to vector<1x256xf32>
    %cst_16 = arith.constant 5.000000e-01 : f32
    %38 = vector.broadcast %cst_16 : f32 to vector<1x256xf32>
    %39 = arith.mulf %38, %32 : vector<1x256xf32>
    %40 = arith.addf %37, %39 : vector<1x256xf32>
    %41 = vector.extract_strided_slice %26 {offsets = [0, 0], sizes = [1, 256], strides = [1, 1]} : vector<4x256xf32> to vector<1x256xf32>
    %42 = vector.extract_strided_slice %26 {offsets = [1, 0], sizes = [1, 256], strides = [1, 1]} : vector<4x256xf32> to vector<1x256xf32>
    %43 = vector.extract_strided_slice %26 {offsets = [2, 0], sizes = [1, 256], strides = [1, 1]} : vector<4x256xf32> to vector<1x256xf32>
    %cst_17 = arith.constant 4.13516665 : f32
    %44 = vector.broadcast %cst_17 : f32 to vector<1x256xf32>
    %45 = arith.minimumf %43, %44 : vector<1x256xf32>
    %46 = vector.extract_strided_slice %26 {offsets = [3, 0], sizes = [1, 256], strides = [1, 1]} : vector<4x256xf32> to vector<1x256xf32>
    %cst_18 = arith.constant 4.13516665 : f32
    %47 = vector.broadcast %cst_18 : f32 to vector<1x256xf32>
    %48 = arith.minimumf %46, %47 : vector<1x256xf32>
    %49 = arith.mulf %41, %29 : vector<1x256xf32>
    %50 = arith.addf %49, %36 : vector<1x256xf32>
    %51 = arith.mulf %42, %32 : vector<1x256xf32>
    %52 = arith.addf %51, %40 : vector<1x256xf32>
    %53 = math.exp %45 : vector<1x256xf32>
    %54 = arith.mulf %53, %29 : vector<1x256xf32>
    %55 = math.exp %48 : vector<1x256xf32>
    %56 = arith.mulf %55, %32 : vector<1x256xf32>
    %cst_19 = arith.constant 5.000000e-01 : f32
    %57 = vector.broadcast %cst_19 : f32 to vector<1x256xf32>
    %58 = arith.mulf %57, %54 : vector<1x256xf32>
    %59 = arith.subf %50, %58 : vector<1x256xf32>
    %cst_20 = arith.constant 0.000000e+00 : f32
    %60 = vector.broadcast %cst_20 : f32 to vector<1x256xf32>
    %61 = arith.maximumf %60, %59 : vector<1x256xf32>
    %62 = vector.broadcast %2 : f32 to vector<1x256xf32>
    %63 = arith.minimumf %62, %61 : vector<1x256xf32>
    %c0_21 = arith.constant 0 : index
    %c0_22 = arith.constant 0 : index
    %c0_23 = arith.constant 0 : index
    %64 = vector.load %arg6[%c0_21, %c0_22, %c0_23] : memref<1x4x256xf32, #tpu.memory_space<vmem>>, vector<1x1x256xf32>
    %65 = vector.shape_cast %64 : vector<1x1x256xf32> to vector<1x256xf32>
    %66 = vector.shape_cast %63 : vector<1x256xf32> to vector<1x1x256xf32>
    tpu.vector_store %arg6[%c0_21, %c0_22, %c0_23], %66 {strides = array<i32>} : memref<1x4x256xf32, #tpu.memory_space<vmem>>, vector<1x1x256xf32>,
    %cst_24 = arith.constant 5.000000e-01 : f32
    %67 = vector.broadcast %cst_24 : f32 to vector<1x256xf32>
    %68 = arith.mulf %67, %56 : vector<1x256xf32>
    %69 = arith.subf %52, %68 : vector<1x256xf32>
    %cst_25 = arith.constant 0.000000e+00 : f32
    %70 = vector.broadcast %cst_25 : f32 to vector<1x256xf32>
    %71 = arith.maximumf %70, %69 : vector<1x256xf32>
    %72 = vector.broadcast %5 : f32 to vector<1x256xf32>
    %73 = arith.minimumf %72, %71 : vector<1x256xf32>
    %c0_26 = arith.constant 0 : index
    %c1_27 = arith.constant 1 : index
    %c0_28 = arith.constant 0 : index
    %74 = vector.load %arg6[%c0_26, %c1_27, %c0_28] : memref<1x4x256xf32, #tpu.memory_space<vmem>>, vector<1x1x256xf32>
    %75 = vector.shape_cast %74 : vector<1x1x256xf32> to vector<1x256xf32>
    %76 = vector.shape_cast %73 : vector<1x256xf32> to vector<1x1x256xf32>
    tpu.vector_store %arg6[%c0_26, %c1_27, %c0_28], %76 {strides = array<i32>} : memref<1x4x256xf32, #tpu.memory_space<vmem>>, vector<1x1x256xf32>,
    %cst_29 = arith.constant 5.000000e-01 : f32
    %77 = vector.broadcast %cst_29 : f32 to vector<1x256xf32>
    %78 = arith.mulf %77, %54 : vector<1x256xf32>
    %79 = arith.addf %50, %78 : vector<1x256xf32>
    %cst_30 = arith.constant 0.000000e+00 : f32
    %80 = vector.broadcast %cst_30 : f32 to vector<1x256xf32>
    %81 = arith.maximumf %80, %79 : vector<1x256xf32>
    %82 = vector.broadcast %2 : f32 to vector<1x256xf32>
    %83 = arith.minimumf %82, %81 : vector<1x256xf32>
    %c0_31 = arith.constant 0 : index
    %c2 = arith.constant 2 : index
    %c0_32 = arith.constant 0 : index
    %84 = vector.load %arg6[%c0_31, %c2, %c0_32] : memref<1x4x256xf32, #tpu.memory_space<vmem>>, vector<1x1x256xf32>
    %85 = vector.shape_cast %84 : vector<1x1x256xf32> to vector<1x256xf32>
    %86 = vector.shape_cast %83 : vector<1x256xf32> to vector<1x1x256xf32>
    tpu.vector_store %arg6[%c0_31, %c2, %c0_32], %86 {strides = array<i32>} : memref<1x4x256xf32, #tpu.memory_space<vmem>>, vector<1x1x256xf32>,
    %cst_33 = arith.constant 5.000000e-01 : f32
    %87 = vector.broadcast %cst_33 : f32 to vector<1x256xf32>
    %88 = arith.mulf %87, %56 : vector<1x256xf32>
    %89 = arith.addf %52, %88 : vector<1x256xf32>
    %cst_34 = arith.constant 0.000000e+00 : f32
    %90 = vector.broadcast %cst_34 : f32 to vector<1x256xf32>
    %91 = arith.maximumf %90, %89 : vector<1x256xf32>
    %92 = vector.broadcast %5 : f32 to vector<1x256xf32>
    %93 = arith.minimumf %92, %91 : vector<1x256xf32>
    %c0_35 = arith.constant 0 : index
    %c3 = arith.constant 3 : index
    %c0_36 = arith.constant 0 : index
    %94 = vector.load %arg6[%c0_35, %c3, %c0_36] : memref<1x4x256xf32, #tpu.memory_space<vmem>>, vector<1x1x256xf32>
    %95 = vector.shape_cast %94 : vector<1x1x256xf32> to vector<1x256xf32>
    %96 = vector.shape_cast %93 : vector<1x256xf32> to vector<1x1x256xf32>
    tpu.vector_store %arg6[%c0_35, %c3, %c0_36], %96 {strides = array<i32>} : memref<1x4x256xf32, #tpu.memory_space<vmem>>, vector<1x1x256xf32>,
    return
  }
  func.func @transform_0(%arg0: i32, %arg1: memref<2x2xi32, #tpu.memory_space<smem>>) -> (i32, i32, i32) {
    %c0_i32 = arith.constant 0 : i32
    %c0_i32_0 = arith.constant 0 : i32
    %c0_i32_1 = arith.constant 0 : i32
    return %arg0, %c0_i32, %c0_i32_0 : i32, i32, i32
  }
  func.func @transform_1(%arg0: i32, %arg1: memref<2x2xi32, #tpu.memory_space<smem>>) -> (i32, i32, i32) {
    %c0_i32 = arith.constant 0 : i32
    %c0_i32_0 = arith.constant 0 : i32
    %c0_i32_1 = arith.constant 0 : i32
    return %arg0, %c0_i32, %c0_i32_0 : i32, i32, i32
  }
  func.func @transform_2(%arg0: i32, %arg1: memref<2x2xi32, #tpu.memory_space<smem>>) -> (i32, i32, i32) {
    %c0_i32 = arith.constant 0 : i32
    %c0_i32_0 = arith.constant 0 : i32
    %c0_i32_1 = arith.constant 0 : i32
    return %arg0, %c0_i32, %c0_i32_0 : i32, i32, i32
  }
  func.func @transform_3(%arg0: i32, %arg1: memref<2x2xi32, #tpu.memory_space<smem>>) -> (i32, i32, i32) {
    %c0_i32 = arith.constant 0 : i32
    %c0_i32_0 = arith.constant 0 : i32
    %c0_i32_1 = arith.constant 0 : i32
    return %arg0, %c0_i32, %c0_i32_0 : i32, i32, i32
  }
  func.func @transform_4(%arg0: i32, %arg1: memref<2x2xi32, #tpu.memory_space<smem>>) -> (i32, i32, i32) {
    %c0_i32 = arith.constant 0 : i32
    %c0_i32_0 = arith.constant 0 : i32
    %c0_i32_1 = arith.constant 0 : i32
    return %arg0, %c0_i32, %c0_i32_0 : i32, i32, i32
  }
}

</mosaic_0001>

<llo_original>
// kernel: neg.19
$region0: #{neg.19}
  #allocation0 [shape = 's32[1]{0}', space=sflag, size = 0x4, scoped, tag = 'scoped memory for neg.19']
  %s0 = inlined_call_operand.vmem [shape: f32[9,1], index: 0, kind: input, shape index: {}]
  %s1 = inlined_call_operand.vmem [shape: f32[9,1], index: 1, kind: output, shape index: {}]
  %v2 = vld [vmem:[%s0] sm:$0x1]
  %3 = xla_tuple %v2
  %4 = xla_tuple %3
  %v5 = vxor.u32 %v2, 2147483648
  %6 = xla_tuple %v5
  %7 = vst [vmem:[%s1] sm:$0x1] %v5

// kernel: _rpn_forward_core.2
$region0: #{_rpn_forward_core.2}
  #allocation0 [shape = 'u32[]', space=smem, size = 0x4, offset = 0x4, fixed_abs, tag = 'smem constant byte address 0x4 - core index']
  #allocation1 [shape = 'u32[144,128]{1,0:T(1,128)}', space=vmem, size = 0x12000, scoped, tag = 'internal scratch']
  %s0 = inlined_call_operand.vmem [shape: bf16[512,36], index: 0, kind: input, shape index: {}]
  %s1 = inlined_call_operand.vmem [shape: bf16[36,8], index: 1, kind: input, shape index: {}]
  %s2 = inlined_call_operand.vmem [shape: f32[1,8], index: 2, kind: input, shape index: {}]
  %s3 = inlined_call_operand.vmem [shape: bf16[8,128], index: 3, kind: input, shape index: {}]
  %s4 = inlined_call_operand.vmem [shape: f32[1,128], index: 4, kind: input, shape index: {}]
  %s5 = inlined_call_operand.vmem [shape: f32[512,128], index: 5, kind: output, shape index: {}]
  %s6 = sld [smem:[#allocation0]]
  $region53: #{_rpn_forward_core.2} parent=0
    _
  %s8 = ssub.s32 1, %s6
  %s9 = scalar_select 0, %s8, %s6
  loop: start=0, step=1, limit=4
  $region2: #{_rpn_forward_core.2} parent=0 // loop_pre_header
    _
  $region3: #{_rpn_forward_core.2} parent=0 // loop_header
    %s11 = sphi 0, %s15
    %p12 = scmp.ge.s32.totalorder %s11, 4
    %s21 = sphi 0, %s23
    %s24 = sphi 0, %s21
    %s25 = sphi 0, %s24
    %s41 = sphi 0, %s25
    %s45 = sphi 0, %s45
    %s47 = sphi 0, %s45
    %s48 = sphi 0, %s47
    %s62 = sphi 0, %s48
    %s66 = sphi 0, %s66
    %s68 = sphi 0, %s66
    %s69 = sphi 0, %s68
    %s83 = sphi 0, %s69
    %s87 = sphi 0, %s87
    %s89 = sphi 0, %s87
    %s90 = sphi 0, %s89
    %s104 = sphi 0, %s90
    %s108 = sphi 0, %s108
    %s110 = sphi 0, %s108
    %s111 = sphi 0, %s110
    %s125 = sphi 0, %s111
    %s131 = sphi 0, %s133
    %s134 = sphi 0, %s131
    %s135 = sphi 0, %s134
    %s151 = sphi 0, %s135
  $region4: #{_rpn_forward_core.2} parent=0 // loop_header_branch
    %14 = sbr.rel (%p12) target = $region8
  $region5: #{_rpn_forward_core.2} parent=0 // loop_body
    %s16 = ssub.s32 %s11, 1
    %s17 = ssub.s32 %s11, 2
    %s18 = sadd.s32 %s11, 1
    %s19 = ssub.s32 %s11, %s18
    %p20 = scmp.eq.s32.totalorder %s19, 0
    %s22 = sadd.s32 %s21, 1
    %s23 = scalar_select %p20, %s21, %s22
    %p26 = pneg %p20
    %p27 = scmp.eq.s32.totalorder %s11, 1
    %p28 = por %p26, %p27
    %p29 = scmp.ne.s32.totalorder %s21, %s24
    %p30 = scmp.eq.s32.totalorder %s11, 0
    %p31 = por %p29, %p30
    %p32 = scmp.ne.s32.totalorder %s21, %s24
    %p33 = scmp.eq.s32.totalorder %s16, 1
    %p34 = por %p32, %p33
    %p35 = scmp.ne.s32.totalorder %s24, %s25
    %p36 = scmp.eq.s32.totalorder %s16, 0
    %p37 = por %p35, %p36
    %p38 = scmp.ne.s32.totalorder %s24, %s25
    %p39 = scmp.eq.s32.totalorder %s17, 1
    %p40 = por %p38, %p39
    %p42 = scmp.ne.s32.totalorder %s25, %s41
    %p43 = scmp.eq.s32.totalorder %s17, 0
    %p44 = por %p42, %p43
    %s46 = sadd.s32 %s45, 1
    %p49 = scmp.eq.s32.totalorder %s11, 1
    %p50 = scmp.ne.s32.totalorder %s45, %s47
    %p51 = scmp.eq.s32.totalorder %s11, 0
    %p52 = por %p50, %p51
    %p53 = scmp.ne.s32.totalorder %s45, %s47
    %p54 = scmp.eq.s32.totalorder %s16, 1
    %p55 = por %p53, %p54
    %p56 = scmp.ne.s32.totalorder %s47, %s48
    %p57 = scmp.eq.s32.totalorder %s16, 0
    %p58 = por %p56, %p57
    %p59 = scmp.ne.s32.totalorder %s47, %s48
    %p60 = scmp.eq.s32.totalorder %s17, 1
    %p61 = por %p59, %p60
    %p63 = scmp.ne.s32.totalorder %s48, %s62
    %p64 = scmp.eq.s32.totalorder %s17, 0
    %p65 = por %p63, %p64
    %s67 = sadd.s32 %s66, 1
    %p70 = scmp.eq.s32.totalorder %s11, 1
    %p71 = scmp.ne.s32.totalorder %s66, %s68
    %p72 = scmp.eq.s32.totalorder %s11, 0
    %p73 = por %p71, %p72
    %p74 = scmp.ne.s32.totalorder %s66, %s68
    %p75 = scmp.eq.s32.totalorder %s16, 1
    %p76 = por %p74, %p75
    %p77 = scmp.ne.s32.totalorder %s68, %s69
    %p78 = scmp.eq.s32.totalorder %s16, 0
    %p79 = por %p77, %p78
    %p80 = scmp.ne.s32.totalorder %s68, %s69
    %p81 = scmp.eq.s32.totalorder %s17, 1
    %p82 = por %p80, %p81
    %p84 = scmp.ne.s32.totalorder %s69, %s83
    %p85 = scmp.eq.s32.totalorder %s17, 0
    %p86 = por %p84, %p85
    %s88 = sadd.s32 %s87, 1
    %p91 = scmp.eq.s32.totalorder %s11, 1
    %p92 = scmp.ne.s32.totalorder %s87, %s89
    %p93 = scmp.eq.s32.totalorder %s11, 0
    %p94 = por %p92, %p93
    %p95 = scmp.ne.s32.totalorder %s87, %s89
    %p96 = scmp.eq.s32.totalorder %s16, 1
    %p97 = por %p95, %p96
    %p98 = scmp.ne.s32.totalorder %s89, %s90
    %p99 = scmp.eq.s32.totalorder %s16, 0
    %p100 = por %p98, %p99
    %p101 = scmp.ne.s32.totalorder %s89, %s90
    %p102 = scmp.eq.s32.totalorder %s17, 1
    %p103 = por %p101, %p102
    %p105 = scmp.ne.s32.totalorder %s90, %s104
    %p106 = scmp.eq.s32.totalorder %s17, 0
    %p107 = por %p105, %p106
    %s109 = sadd.s32 %s108, 1
    %p112 = scmp.eq.s32.totalorder %s11, 1
    %p113 = scmp.ne.s32.totalorder %s108, %s110
    %p114 = scmp.eq.s32.totalorder %s11, 0
    %p115 = por %p113, %p114
    %p116 = scmp.ne.s32.totalorder %s108, %s110
    %p117 = scmp.eq.s32.totalorder %s16, 1
    %p118 = por %p116, %p117
    %p119 = scmp.ne.s32.totalorder %s110, %s111
    %p120 = scmp.eq.s32.totalorder %s16, 0
    %p121 = por %p119, %p120
    %p122 = scmp.ne.s32.totalorder %s110, %s111
    %p123 = scmp.eq.s32.totalorder %s17, 1
    %p124 = por %p122, %p123
    %p126 = scmp.ne.s32.totalorder %s111, %s125
    %p127 = scmp.eq.s32.totalorder %s17, 0
    %p128 = por %p126, %p127
    %s129 = ssub.s32 %s11, %s18
    %p130 = scmp.eq.s32.totalorder %s129, 0
    %s132 = sadd.s32 %s131, 1
    %s133 = scalar_select %p130, %s131, %s132
    %p136 = pneg %p130
    %p137 = scmp.eq.s32.totalorder %s11, 1
    %p138 = por %p136, %p137
    %p139 = scmp.ne.s32.totalorder %s131, %s134
    %p140 = scmp.eq.s32.totalorder %s11, 0
    %p141 = por %p139, %p140
    %p142 = scmp.ne.s32.totalorder %s131, %s134
    %p143 = scmp.eq.s32.totalorder %s16, 1
    %p144 = por %p142, %p143
    %p145 = scmp.ne.s32.totalorder %s134, %s135
    %p146 = scmp.eq.s32.totalorder %s16, 0
    %p147 = por %p145, %p146
    %p148 = scmp.ne.s32.totalorder %s134, %s135
    %p149 = scmp.eq.s32.totalorder %s17, 1
    %p150 = por %p148, %p149
    %p152 = scmp.ne.s32.totalorder %s135, %s151
    %p153 = scmp.eq.s32.totalorder %s17, 0
    %p154 = por %p152, %p153
    %p155 = scmp.le.s32.totalorder 1, %s11
    %p156 = scmp.lt.s32.totalorder %s11, 3
    %p157 = pnand %p155, %p156
    %p158 = pneg %p157
    // Predicated region
    $region9: #{_rpn_forward_core.2} parent=5 // pred_check
      _
    $region10: #{_rpn_forward_core.2} parent=5 // pred_check_branch
      %160 = sbr.rel (%p157) target = $region12
    $region11: #{_rpn_forward_core.2} parent=5 // pred_region
      %s161 = ssub.s32 %s11, 1
      // Predicated region
      $region13: #{_rpn_forward_core.2} parent=11 // pred_check
        %p162 = pneg %p58
      $region14: #{_rpn_forward_core.2} parent=11 // pred_check_branch
        %164 = sbr.rel (%p162) target = $region16
      $region15: #{_rpn_forward_core.2} parent=11 // pred_region
        _
      $region16: #{_rpn_forward_core.2} parent=11 // pred_fallthru
        _
      // Predicated region
      $region17: #{_rpn_forward_core.2} parent=11 // pred_check
        %p165 = pneg %p79
      $region18: #{_rpn_forward_core.2} parent=11 // pred_check_branch
        %167 = sbr.rel (%p165) target = $region20
      $region19: #{_rpn_forward_core.2} parent=11 // pred_region
        _
      $region20: #{_rpn_forward_core.2} parent=11 // pred_fallthru
        _
      // Predicated region
      $region21: #{_rpn_forward_core.2} parent=11 // pred_check
        %p168 = pneg %p100
      $region22: #{_rpn_forward_core.2} parent=11 // pred_check_branch
        %170 = sbr.rel (%p168) target = $region24
      $region23: #{_rpn_forward_core.2} parent=11 // pred_region
        _
      $region24: #{_rpn_forward_core.2} parent=11 // pred_fallthru
        _
      // Predicated region
      $region25: #{_rpn_forward_core.2} parent=11 // pred_check
        %p171 = pneg %p121
      $region26: #{_rpn_forward_core.2} parent=11 // pred_check_branch
        %173 = sbr.rel (%p171) target = $region28
      $region27: #{_rpn_forward_core.2} parent=11 // pred_region
        _
      $region28: #{_rpn_forward_core.2} parent=11 // pred_fallthru
        _
    $region12: #{_rpn_forward_core.2} parent=5 // pred_fallthru
      _
    %p174 = scmp.lt.s32.totalorder %s11, 2
    // Predicated region
    $region29: #{_rpn_forward_core.2} parent=5 // pred_check
      %p175 = pneg %p174
    $region30: #{_rpn_forward_core.2} parent=5 // pred_check_branch
      %177 = sbr.rel (%p175) target = $region32
    $region31: #{_rpn_forward_core.2} parent=5 // pred_region
      // Predicated region
      $region33: #{_rpn_forward_core.2} parent=31 // pred_check
        %p178 = pneg %p31
      $region34: #{_rpn_forward_core.2} parent=31 // pred_check_branch
        %180 = sbr.rel (%p178) target = $region36
      $region35: #{_rpn_forward_core.2} parent=31 // pred_region
        %s181 = smul.u32 32, %s11
        %p182 = scmp.lt.s32.totalorder %s181, 63
        %s183 = scalar_select %p182, %s181, 63
        %s184 = smul.addr %s183, 4
        %s185 = scalar_lea.vmem %s0, %s184
        %s186 = smul.u32 32, %s11
      $region36: #{_rpn_forward_core.2} parent=31 // pred_fallthru
        _
    $region32: #{_rpn_forward_core.2} parent=5 // pred_fallthru
      _
    %p187 = scmp.le.s32.totalorder 1, %s11
    %p188 = scmp.lt.s32.totalorder %s11, 3
    %p189 = pnand %p187, %p188
    %p190 = pneg %p189
    // Predicated region
    $region37: #{_rpn_forward_core.2} parent=5 // pred_check
      _
    $region38: #{_rpn_forward_core.2} parent=5 // pred_check_branch
      %192 = sbr.rel (%p189) target = $region40
    $region39: #{_rpn_forward_core.2} parent=5 // pred_region
      %s193 = ssub.s32 %s11, 1
      %s194 = smul.u32 32, %s16
      %p195 = scmp.lt.s32.totalorder %s194, 63
      %s196 = scalar_select %p195, %s194, 63
      %s197 = smul.addr %s196, 4
      %s198 = scalar_lea.vmem %s0, %s197
      %p199 = pneg %p37
      %p200 = pneg %p34
      %p201 = pneg %p58
      %p202 = pneg %p55
      %p203 = pneg %p79
      %p204 = pneg %p76
      %p205 = pneg %p100
      %p206 = pneg %p97
      %p207 = pneg %p121
      %p208 = pneg %p118
      %p209 = pneg %p147
      %p210 = pneg %p144
      %s211 = smul.u32 32, %s16
      %p212 = scmp.lt.s32.totalorder %s211, 63
      %s213 = scalar_select %p212, %s211, 63
      %s214 = smul.addr %s213, 8
      %s215 = scalar_lea.vmem %s5, %s214
      %s216 = smul.u32 32, %s16
      %p217 = scmp.lt.s32.totalorder %s216, 63
      %s218 = scalar_select %p217, %s216, 63
      %s219 = smul.addr %s218, 4
      %s220 = scalar_lea.vmem %s0, %s219
      %s221 = smul.u32 32, %s16
      %s222 = smul.u32 32, %s16
      %p223 = scmp.lt.s32.totalorder %s222, 63
      %s224 = scalar_select %p223, %s222, 63
      %s225 = smul.addr %s224, 8
      %s226 = scalar_lea.vmem %s5, %s225
      %s227 = smul.u32 32, %s16
      %v229 = vld [vmem:[%s220] sm:$0xf]
      %v230 = vld [vmem:[%s220 + $0x4] sm:$0xf]
      %v231 = vld [vmem:[%s220 + $0x8] sm:$0xf]
      %v232 = vld [vmem:[%s220 + $0xc] sm:$0xf]
      %v233 = vld [vmem:[%s220 + $0x10] sm:$0xf]
      %v234 = vld [vmem:[%s220 + $0x14] sm:$0xf]
      %v235 = vld [vmem:[%s220 + $0x18] sm:$0xf]
      %v236 = vld [vmem:[%s220 + $0x1c] sm:$0xf]
      %v237 = vld [vmem:[%s220 + $0x20] sm:$0xf]
      %v238 = vld [vmem:[%s220 + $0x24] sm:$0xf]
      %v239 = vld [vmem:[%s220 + $0x28] sm:$0xf]
      %v240 = vld [vmem:[%s220 + $0x2c] sm:$0xf]
      %v241 = vld [vmem:[%s220 + $0x30] sm:$0xf]
      %v242 = vld [vmem:[%s220 + $0x34] sm:$0xf]
      %v243 = vld [vmem:[%s220 + $0x38] sm:$0xf]
      %v244 = vld [vmem:[%s220 + $0x3c] sm:$0xf]
      %v245 = vld [vmem:[%s220 + $0x40] sm:$0xf]
      %v246 = vld [vmem:[%s220 + $0x44] sm:$0xf]
      %v247 = vld [vmem:[%s220 + $0x48] sm:$0xf]
      %v248 = vld [vmem:[%s220 + $0x4c] sm:$0xf]
      %v249 = vld [vmem:[%s220 + $0x50] sm:$0xf]
      %v250 = vld [vmem:[%s220 + $0x54] sm:$0xf]
      %v251 = vld [vmem:[%s220 + $0x58] sm:$0xf]
      %v252 = vld [vmem:[%s220 + $0x5c] sm:$0xf]
      %v253 = vld [vmem:[%s220 + $0x60] sm:$0xf]
      %v254 = vld [vmem:[%s220 + $0x64] sm:$0xf]
      %v255 = vld [vmem:[%s220 + $0x68] sm:$0xf]
      %v256 = vld [vmem:[%s220 + $0x6c] sm:$0xf]
      %v257 = vld [vmem:[%s220 + $0x70] sm:$0xf]
      %v258 = vld [vmem:[%s220 + $0x74] sm:$0xf]
      %v259 = vld [vmem:[%s220 + $0x78] sm:$0xf]
      %v260 = vld [vmem:[%s220 + $0x7c] sm:$0xf]
      %v261 = vld [vmem:[%s1] sm:$0xf]
      %v262 = vld [vmem:[%s1 + $0x4] sm:$0xf]
      %v263 = vld [vmem:[%s1 + $0x8] sm:$0xf]
      %v264 = vld [vmem:[%s1 + $0xc] sm:$0xf]
      %v265 = vld [vmem:[%s1 + $0x10] sm:$0x3]
      %v266 = vld [vmem:[%s2] sm:$0x1]
      %v268 = vlaneseq
      %v269 = vshrl.u32 %v268, 7
      %v270 = vsub.s32 0, %v269
      %v271 = vrot.slane %v266, %v270
      %v305 = vunpack.c.l.b16 %v229
      %v306 = vunpack.c.l.b16 %v230
      %v307 = vunpack.c.l.b16 %v231
      %v308 = vunpack.c.l.b16 %v232
      %v309 = vunpack.c.l.b16 %v233
      %v310 = vunpack.c.l.b16 %v234
      %v311 = vunpack.c.l.b16 %v235
      %v312 = vunpack.c.l.b16 %v236
      %v313 = vunpack.c.l.b16 %v237
      %v314 = vunpack.c.l.b16 %v238
      %v315 = vunpack.c.l.b16 %v239
      %v316 = vunpack.c.l.b16 %v240
      %v317 = vunpack.c.l.b16 %v241
      %v318 = vunpack.c.l.b16 %v242
      %v319 = vunpack.c.l.b16 %v243
      %v320 = vunpack.c.l.b16 %v244
      %v321 = vunpack.c.l.b16 %v245
      %v322 = vunpack.c.l.b16 %v246
      %v323 = vunpack.c.l.b16 %v247
      %v324 = vunpack.c.l.b16 %v248
      %v325 = vunpack.c.l.b16 %v249
      %v326 = vunpack.c.l.b16 %v250
      %v327 = vunpack.c.l.b16 %v251
      %v328 = vunpack.c.l.b16 %v252
      %v329 = vunpack.c.l.b16 %v253
      %v330 = vunpack.c.l.b16 %v254
      %v331 = vunpack.c.l.b16 %v255
      %v332 = vunpack.c.l.b16 %v256
      %v333 = vunpack.c.l.b16 %v257
      %v334 = vunpack.c.l.b16 %v258
      %v335 = vunpack.c.l.b16 %v259
      %v336 = vunpack.c.l.b16 %v260
      %v337 = vpack.c.b16 %v306, %v305
      %v338 = vpack.c.b16 %v308, %v307
      %v339 = vpack.c.b16 %v310, %v309
      %v340 = vpack.c.b16 %v312, %v311
      %v341 = vpack.c.b16 %v314, %v313
      %v342 = vpack.c.b16 %v316, %v315
      %v343 = vpack.c.b16 %v318, %v317
      %v344 = vpack.c.b16 %v320, %v319
      %v345 = vpack.c.b16 %v322, %v321
      %v346 = vpack.c.b16 %v324, %v323
      %v347 = vpack.c.b16 %v326, %v325
      %v348 = vpack.c.b16 %v328, %v327
      %v349 = vpack.c.b16 %v330, %v329
      %v350 = vpack.c.b16 %v332, %v331
      %v351 = vpack.c.b16 %v334, %v333
      %v352 = vpack.c.b16 %v336, %v335
      %v358 = vunpack.c.l.b16 %v261
      %v359 = vunpack.c.l.b16 %v262
      %v360 = vunpack.c.l.b16 %v263
      %v361 = vunpack.c.l.b16 %v264
      %v362 = vunpack.c.l.b16 %v265
      %v363 = vpack.c.b16 %v359, %v358
      %v364 = vpack.c.b16 %v361, %v360
      %v365 = vpack.c.b16 %v362, %v362
      %vm368 = vcmask 293888
      %v370 = vsel %vm368, %v337, 0
      %v373 = vsel %vm368, %v338, 0
      %v376 = vsel %vm368, %v339, 0
      %v379 = vsel %vm368, %v340, 0
      %v382 = vsel %vm368, %v341, 0
      %v385 = vsel %vm368, %v342, 0
      %v388 = vsel %vm368, %v343, 0
      %v391 = vsel %vm368, %v344, 0
      %v394 = vsel %vm368, %v345, 0
      %v397 = vsel %vm368, %v346, 0
      %v400 = vsel %vm368, %v347, 0
      %v403 = vsel %vm368, %v348, 0
      %v406 = vsel %vm368, %v349, 0
      %v409 = vsel %vm368, %v350, 0
      %v412 = vsel %vm368, %v351, 0
      %v415 = vsel %vm368, %v352, 0
      %vm417 = vcmask 1041408
      %v419 = vsel %vm417, %v365, 0
      %421 = vmatprep.subr.bf16.mxu0 0
      %422 = vmatpush1.bf16.msra.mxu0 0
      %423 = vmatprep.subr.bf16.mxu0 0
      %424 = vmatpush1.bf16.msra.mxu0 0
      %425 = vmatprep.subr.bf16.mxu0 0
      %426 = vmatpush1.bf16.msra.mxu0 0
      %427 = vmatprep.subr.bf16.mxu0 0
      %428 = vmatpush1.bf16.msra.mxu0 0
      %429 = vmatprep.subr.bf16.mxu0 0
      %430 = vmatpush1.bf16.msra.mxu0 0
      %431 = vmatprep.subr.bf16.mxu0 0
      %432 = vmatpush1.bf16.msra.mxu0 %v419
      %433 = vmatprep.subr.bf16.mxu0 0
      %434 = vmatpush1.bf16.msra.mxu0 %v364
      %435 = vmatprep.subr.bf16.mxu0 0
      %436 = vmatpush1.bf16.msra.mxu0 %v363
      %437 = vmatprep.subr.bf16.mxu0 0
      %438 = vmatpush2.bf16.msra.mxu0 0
      %439 = vmatprep.subr.bf16.mxu0 0
      %440 = vmatpush2.bf16.msra.mxu0 0
      %441 = vmatprep.subr.bf16.mxu0 0
      %442 = vmatpush2.bf16.msra.mxu0 0
      %443 = vmatprep.subr.bf16.mxu0 0
      %444 = vmatpush2.bf16.msra.mxu0 0
      %445 = vmatprep.subr.bf16.mxu0 0
      %446 = vmatpush2.bf16.msra.mxu0 0
      %447 = vmatprep.subr.bf16.mxu0 0
      %448 = vmatpush2.bf16.msra.mxu0 0
      %449 = vmatprep.subr.bf16.mxu0 0
      %450 = vmatpush2.bf16.msra.mxu0 0
      %451 = vmatprep.subr.bf16.mxu0 0
      %452 = vmatpush2.bf16.msra.mxu0 0
      %453 = vmatprep.mubr.bf16.mxu0 0
      %454 = vmatmul.mubr.bf16.gmra.mxu0 %v370
      %v455 = vpop.f32.mrf.mxu0
      %v456 = vadd.f32 %v271, %v455
      %v457 = vpop.f32.mrf.mxu0
      %v458 = vpop.f32.mrf.mxu0
      %v459 = vadd.f32 %v271, %v458
      %v460 = vpop.f32.mrf.mxu0
      %461 = vmatprep.mubr.bf16.mxu0 0
      %462 = vmatmul.mubr.bf16.gmra.mxu0 %v373
      %v463 = vpop.f32.mrf.mxu0
      %v464 = vadd.f32 %v271, %v463
      %v465 = vpop.f32.mrf.mxu0
      %v466 = vpop.f32.mrf.mxu0
      %v467 = vadd.f32 %v271, %v466
      %v468 = vpop.f32.mrf.mxu0
      %469 = vmatprep.mubr.bf16.mxu0 0
      %470 = vmatmul.mubr.bf16.gmra.mxu0 %v376
      %v471 = vpop.f32.mrf.mxu0
      %v472 = vadd.f32 %v271, %v471
      %v473 = vpop.f32.mrf.mxu0
      %v474 = vpop.f32.mrf.mxu0
      %v475 = vadd.f32 %v271, %v474
      %v476 = vpop.f32.mrf.mxu0
      %477 = vmatprep.mubr.bf16.mxu0 0
      %478 = vmatmul.mubr.bf16.gmra.mxu0 %v379
      %v479 = vpop.f32.mrf.mxu0
      %v480 = vadd.f32 %v271, %v479
      %v481 = vpop.f32.mrf.mxu0
      %v482 = vpop.f32.mrf.mxu0
      %v483 = vadd.f32 %v271, %v482
      %v484 = vpop.f32.mrf.mxu0
      %485 = vmatprep.mubr.bf16.mxu0 0
      %486 = vmatmul.mubr.bf16.gmra.mxu0 %v382
      %v487 = vpop.f32.mrf.mxu0
      %v488 = vadd.f32 %v271, %v487
      %v489 = vpop.f32.mrf.mxu0
      %v490 = vpop.f32.mrf.mxu0
      %v491 = vadd.f32 %v271, %v490
      %v492 = vpop.f32.mrf.mxu0
      %493 = vmatprep.mubr.bf16.mxu0 0
      %494 = vmatmul.mubr.bf16.gmra.mxu0 %v385
      %v495 = vpop.f32.mrf.mxu0
      %v496 = vadd.f32 %v271, %v495
      %v497 = vpop.f32.mrf.mxu0
      %v498 = vpop.f32.mrf.mxu0
      %v499 = vadd.f32 %v271, %v498
      %v500 = vpop.f32.mrf.mxu0
      %501 = vmatprep.mubr.bf16.mxu0 0
      %502 = vmatmul.mubr.bf16.gmra.mxu0 %v388
      %v503 = vpop.f32.mrf.mxu0
      %v504 = vadd.f32 %v271, %v503
      %v505 = vpop.f32.mrf.mxu0
      %v506 = vpop.f32.mrf.mxu0
      %v507 = vadd.f32 %v271, %v506
      %v508 = vpop.f32.mrf.mxu0
      %509 = vmatprep.mubr.bf16.mxu0 0
      %510 = vmatmul.mubr.bf16.gmra.mxu0 %v391
      %v511 = vpop.f32.mrf.mxu0
      %v512 = vadd.f32 %v271, %v511
      %v513 = vpop.f32.mrf.mxu0
      %v514 = vpop.f32.mrf.mxu0
      %v515 = vadd.f32 %v271, %v514
      %v516 = vpop.f32.mrf.mxu0
      %517 = vmatprep.mubr.bf16.mxu0 0
      %518 = vmatmul.mubr.bf16.gmra.mxu0 %v394
      %v519 = vpop.f32.mrf.mxu0
      %v520 = vadd.f32 %v271, %v519
      %v521 = vpop.f32.mrf.mxu0
      %v522 = vpop.f32.mrf.mxu0
      %v523 = vadd.f32 %v271, %v522
      %v524 = vpop.f32.mrf.mxu0
      %525 = vmatprep.mubr.bf16.mxu0 0
      %526 = vmatmul.mubr.bf16.gmra.mxu0 %v397
      %v527 = vpop.f32.mrf.mxu0
      %v528 = vadd.f32 %v271, %v527
      %v529 = vpop.f32.mrf.mxu0
      %v530 = vpop.f32.mrf.mxu0
      %v531 = vadd.f32 %v271, %v530
      %v532 = vpop.f32.mrf.mxu0
      %533 = vmatprep.mubr.bf16.mxu0 0
      %534 = vmatmul.mubr.bf16.gmra.mxu0 %v400
      %v535 = vpop.f32.mrf.mxu0
      %v536 = vadd.f32 %v271, %v535
      %v537 = vpop.f32.mrf.mxu0
      %v538 = vpop.f32.mrf.mxu0
      %v539 = vadd.f32 %v271, %v538
      %v540 = vpop.f32.mrf.mxu0
      %541 = vmatprep.mubr.bf16.mxu0 0
      %542 = vmatmul.mubr.bf16.gmra.mxu0 %v403
      %v543 = vpop.f32.mrf.mxu0
      %v544 = vadd.f32 %v271, %v543
      %v545 = vpop.f32.mrf.mxu0
      %v546 = vpop.f32.mrf.mxu0
      %v547 = vadd.f32 %v271, %v546
      %v548 = vpop.f32.mrf.mxu0
      %549 = vmatprep.mubr.bf16.mxu0 0
      %550 = vmatmul.mubr.bf16.gmra.mxu0 %v406
      %v551 = vpop.f32.mrf.mxu0
      %v552 = vadd.f32 %v271, %v551
      %v553 = vpop.f32.mrf.mxu0
      %v554 = vpop.f32.mrf.mxu0
      %v555 = vadd.f32 %v271, %v554
      %v556 = vpop.f32.mrf.mxu0
      %557 = vmatprep.mubr.bf16.mxu0 0
      %558 = vmatmul.mubr.bf16.gmra.mxu0 %v409
      %v559 = vpop.f32.mrf.mxu0
      %v560 = vadd.f32 %v271, %v559
      %v561 = vpop.f32.mrf.mxu0
      %v562 = vpop.f32.mrf.mxu0
      %v563 = vadd.f32 %v271, %v562
      %v564 = vpop.f32.mrf.mxu0
      %565 = vmatprep.mubr.bf16.mxu0 0
      %566 = vmatmul.mubr.bf16.gmra.mxu0 %v412
      %v567 = vpop.f32.mrf.mxu0
      %v568 = vadd.f32 %v271, %v567
      %v569 = vpop.f32.mrf.mxu0
      %v570 = vpop.f32.mrf.mxu0
      %v571 = vadd.f32 %v271, %v570
      %v572 = vpop.f32.mrf.mxu0
      %573 = vmatprep.mubr.bf16.mxu0 0
      %574 = vmatmul.mubr.bf16.gmra.mxu0 %v415
      %v575 = vpop.f32.mrf.mxu0
      %v576 = vadd.f32 %v271, %v575
      %v577 = vpop.f32.mrf.mxu0
      %v578 = vpop.f32.mrf.mxu0
      %v579 = vadd.f32 %v271, %v578
      %v580 = vpop.f32.mrf.mxu0
      %581 = vdwg.mxu0
      %v582 = vmax.f32 %v456, 0.0
      %v583 = vmax.f32 %v459, 0.0
      %v584 = vmax.f32 %v464, 0.0
      %v585 = vmax.f32 %v467, 0.0
      %v586 = vmax.f32 %v472, 0.0
      %v587 = vmax.f32 %v475, 0.0
      %v588 = vmax.f32 %v480, 0.0
      %v589 = vmax.f32 %v483, 0.0
      %v590 = vmax.f32 %v488, 0.0
      %v591 = vmax.f32 %v491, 0.0
      %v592 = vmax.f32 %v496, 0.0
      %v593 = vmax.f32 %v499, 0.0
      %v594 = vmax.f32 %v504, 0.0
      %v595 = vmax.f32 %v507, 0.0
      %v596 = vmax.f32 %v512, 0.0
      %v597 = vmax.f32 %v515, 0.0
      %v598 = vmax.f32 %v520, 0.0
      %v599 = vmax.f32 %v523, 0.0
      %v600 = vmax.f32 %v528, 0.0
      %v601 = vmax.f32 %v531, 0.0
      %v602 = vmax.f32 %v536, 0.0
      %v603 = vmax.f32 %v539, 0.0
      %v604 = vmax.f32 %v544, 0.0
      %v605 = vmax.f32 %v547, 0.0
      %v606 = vmax.f32 %v552, 0.0
      %v607 = vmax.f32 %v555, 0.0
      %v608 = vmax.f32 %v560, 0.0
      %v609 = vmax.f32 %v563, 0.0
      %v610 = vmax.f32 %v568, 0.0
      %v611 = vmax.f32 %v571, 0.0
      %v612 = vmax.f32 %v576, 0.0
      %v613 = vmax.f32 %v579, 0.0
      %v614 = vpack.c.bf16 %v583, %v582
      %v615 = vpack.c.bf16 %v585, %v584
      %v616 = vpack.c.bf16 %v587, %v586
      %v617 = vpack.c.bf16 %v589, %v588
      %v618 = vpack.c.bf16 %v591, %v590
      %v619 = vpack.c.bf16 %v593, %v592
      %v620 = vpack.c.bf16 %v595, %v594
      %v621 = vpack.c.bf16 %v597, %v596
      %v622 = vpack.c.bf16 %v599, %v598
      %v623 = vpack.c.bf16 %v601, %v600
      %v624 = vpack.c.bf16 %v603, %v602
      %v625 = vpack.c.bf16 %v605, %v604
      %v626 = vpack.c.bf16 %v607, %v606
      %v627 = vpack.c.bf16 %v609, %v608
      %v628 = vpack.c.bf16 %v611, %v610
      %v629 = vpack.c.bf16 %v613, %v612
      %v630 = vld [vmem:[%s3] sm:$0xf]
      %v631 = vld [vmem:[%s4] sm:$0x1]
      %v633 = vlaneseq
      %v634 = vshrl.u32 %v633, 7
      %v635 = vsub.s32 0, %v634
      %v636 = vrot.slane %v631, %v635
      %vm638 = vcmask 64512
      %v640 = vsel %vm638, %v614, 0
      %v643 = vsel %vm638, %v615, 0
      %v646 = vsel %vm638, %v616, 0
      %v649 = vsel %vm638, %v617, 0
      %v652 = vsel %vm638, %v618, 0
      %v655 = vsel %vm638, %v619, 0
      %v658 = vsel %vm638, %v620, 0
      %v661 = vsel %vm638, %v621, 0
      %v664 = vsel %vm638, %v622, 0
      %v667 = vsel %vm638, %v623, 0
      %v670 = vsel %vm638, %v624, 0
      %v673 = vsel %vm638, %v625, 0
      %v676 = vsel %vm638, %v626, 0
      %v679 = vsel %vm638, %v627, 0
      %v682 = vsel %vm638, %v628, 0
      %v685 = vsel %vm638, %v629, 0
      %vm687 = vcmask 1043456
      %v689 = vsel %vm687, %v630, 0
      %691 = vmatprep.subr.bf16.mxu0 0
      %692 = vmatpush1.bf16.msra.mxu0 0
      %693 = vmatprep.subr.bf16.mxu0 0
      %694 = vmatpush1.bf16.msra.mxu0 0
      %695 = vmatprep.subr.bf16.mxu0 0
      %696 = vmatpush1.bf16.msra.mxu0 0
      %697 = vmatprep.subr.bf16.mxu0 0
      %698 = vmatpush1.bf16.msra.mxu0 0
      %699 = vmatprep.subr.bf16.mxu0 0
      %700 = vmatpush1.bf16.msra.mxu0 0
      %701 = vmatprep.subr.bf16.mxu0 0
      %702 = vmatpush1.bf16.msra.mxu0 0
      %703 = vmatprep.subr.bf16.mxu0 0
      %704 = vmatpush1.bf16.msra.mxu0 0
      %705 = vmatprep.subr.bf16.mxu0 0
      %706 = vmatpush1.bf16.msra.mxu0 %v689
      %707 = vmatprep.subr.bf16.mxu0 0
      %708 = vmatpush2.bf16.msra.mxu0 0
      %709 = vmatprep.subr.bf16.mxu0 0
      %710 = vmatpush2.bf16.msra.mxu0 0
      %711 = vmatprep.subr.bf16.mxu0 0
      %712 = vmatpush2.bf16.msra.mxu0 0
      %713 = vmatprep.subr.bf16.mxu0 0
      %714 = vmatpush2.bf16.msra.mxu0 0
      %715 = vmatprep.subr.bf16.mxu0 0
      %716 = vmatpush2.bf16.msra.mxu0 0
      %717 = vmatprep.subr.bf16.mxu0 0
      %718 = vmatpush2.bf16.msra.mxu0 0
      %719 = vmatprep.subr.bf16.mxu0 0
      %720 = vmatpush2.bf16.msra.mxu0 0
      %721 = vmatprep.subr.bf16.mxu0 0
      %722 = vmatpush2.bf16.msra.mxu0 0
      %723 = vmatprep.mubr.bf16.mxu0 0
      %724 = vmatmul.mubr.bf16.gmra.mxu0 %v640
      %v725 = vpop.f32.mrf.mxu0
      %v726 = vadd.f32 %v636, %v725
      %v727 = vpop.f32.mrf.mxu0
      %v728 = vpop.f32.mrf.mxu0
      %v729 = vadd.f32 %v636, %v728
      %v730 = vpop.f32.mrf.mxu0
      %731 = vmatprep.mubr.bf16.mxu0 0
      %732 = vmatmul.mubr.bf16.gmra.mxu0 %v643
      %v733 = vpop.f32.mrf.mxu0
      %v734 = vadd.f32 %v636, %v733
      %v735 = vpop.f32.mrf.mxu0
      %v736 = vpop.f32.mrf.mxu0
      %v737 = vadd.f32 %v636, %v736
      %v738 = vpop.f32.mrf.mxu0
      %739 = vmatprep.mubr.bf16.mxu0 0
      %740 = vmatmul.mubr.bf16.gmra.mxu0 %v646
      %v741 = vpop.f32.mrf.mxu0
      %v742 = vadd.f32 %v636, %v741
      %v743 = vpop.f32.mrf.mxu0
      %v744 = vpop.f32.mrf.mxu0
      %v745 = vadd.f32 %v636, %v744
      %v746 = vpop.f32.mrf.mxu0
      %747 = vmatprep.mubr.bf16.mxu0 0
      %748 = vmatmul.mubr.bf16.gmra.mxu0 %v649
      %v749 = vpop.f32.mrf.mxu0
      %v750 = vadd.f32 %v636, %v749
      %v751 = vpop.f32.mrf.mxu0
      %v752 = vpop.f32.mrf.mxu0
      %v753 = vadd.f32 %v636, %v752
      %v754 = vpop.f32.mrf.mxu0
      %755 = vmatprep.mubr.bf16.mxu0 0
      %756 = vmatmul.mubr.bf16.gmra.mxu0 %v652
      %v757 = vpop.f32.mrf.mxu0
      %v758 = vadd.f32 %v636, %v757
      %v759 = vpop.f32.mrf.mxu0
      %v760 = vpop.f32.mrf.mxu0
      %v761 = vadd.f32 %v636, %v760
      %v762 = vpop.f32.mrf.mxu0
      %763 = vmatprep.mubr.bf16.mxu0 0
      %764 = vmatmul.mubr.bf16.gmra.mxu0 %v655
      %v765 = vpop.f32.mrf.mxu0
      %v766 = vadd.f32 %v636, %v765
      %v767 = vpop.f32.mrf.mxu0
      %v768 = vpop.f32.mrf.mxu0
      %v769 = vadd.f32 %v636, %v768
      %v770 = vpop.f32.mrf.mxu0
      %771 = vmatprep.mubr.bf16.mxu0 0
      %772 = vmatmul.mubr.bf16.gmra.mxu0 %v658
      %v773 = vpop.f32.mrf.mxu0
      %v774 = vadd.f32 %v636, %v773
      %v775 = vpop.f32.mrf.mxu0
      %v776 = vpop.f32.mrf.mxu0
      %v777 = vadd.f32 %v636, %v776
      %v778 = vpop.f32.mrf.mxu0
      %779 = vmatprep.mubr.bf16.mxu0 0
      %780 = vmatmul.mubr.bf16.gmra.mxu0 %v661
      %v781 = vpop.f32.mrf.mxu0
      %v782 = vadd.f32 %v636, %v781
      %v783 = vpop.f32.mrf.mxu0
      %v784 = vpop.f32.mrf.mxu0
      %v785 = vadd.f32 %v636, %v784
      %v786 = vpop.f32.mrf.mxu0
      %787 = vmatprep.mubr.bf16.mxu0 0
      %788 = vmatmul.mubr.bf16.gmra.mxu0 %v664
      %v789 = vpop.f32.mrf.mxu0
      %v790 = vadd.f32 %v636, %v789
      %v791 = vpop.f32.mrf.mxu0
      %v792 = vpop.f32.mrf.mxu0
      %v793 = vadd.f32 %v636, %v792
      %v794 = vpop.f32.mrf.mxu0
      %795 = vmatprep.mubr.bf16.mxu0 0
      %796 = vmatmul.mubr.bf16.gmra.mxu0 %v667
      %v797 = vpop.f32.mrf.mxu0
      %v798 = vadd.f32 %v636, %v797
      %v799 = vpop.f32.mrf.mxu0
      %v800 = vpop.f32.mrf.mxu0
      %v801 = vadd.f32 %v636, %v800
      %v802 = vpop.f32.mrf.mxu0
      %803 = vmatprep.mubr.bf16.mxu0 0
      %804 = vmatmul.mubr.bf16.gmra.mxu0 %v670
      %v805 = vpop.f32.mrf.mxu0
      %v806 = vadd.f32 %v636, %v805
      %v807 = vpop.f32.mrf.mxu0
      %v808 = vpop.f32.mrf.mxu0
      %v809 = vadd.f32 %v636, %v808
      %v810 = vpop.f32.mrf.mxu0
      %811 = vmatprep.mubr.bf16.mxu0 0
      %812 = vmatmul.mubr.bf16.gmra.mxu0 %v673
      %v813 = vpop.f32.mrf.mxu0
      %v814 = vadd.f32 %v636, %v813
      %v815 = vpop.f32.mrf.mxu0
      %v816 = vpop.f32.mrf.mxu0
      %v817 = vadd.f32 %v636, %v816
      %v818 = vpop.f32.mrf.mxu0
      %819 = vmatprep.mubr.bf16.mxu0 0
      %820 = vmatmul.mubr.bf16.gmra.mxu0 %v676
      %v821 = vpop.f32.mrf.mxu0
      %v822 = vadd.f32 %v636, %v821
      %v823 = vpop.f32.mrf.mxu0
      %v824 = vpop.f32.mrf.mxu0
      %v825 = vadd.f32 %v636, %v824
      %v826 = vpop.f32.mrf.mxu0
      %827 = vmatprep.mubr.bf16.mxu0 0
      %828 = vmatmul.mubr.bf16.gmra.mxu0 %v679
      %v829 = vpop.f32.mrf.mxu0
      %v830 = vadd.f32 %v636, %v829
      %v831 = vpop.f32.mrf.mxu0
      %v832 = vpop.f32.mrf.mxu0
      %v833 = vadd.f32 %v636, %v832
      %v834 = vpop.f32.mrf.mxu0
      %835 = vmatprep.mubr.bf16.mxu0 0
      %836 = vmatmul.mubr.bf16.gmra.mxu0 %v682
      %v837 = vpop.f32.mrf.mxu0
      %v838 = vadd.f32 %v636, %v837
      %v839 = vpop.f32.mrf.mxu0
      %v840 = vpop.f32.mrf.mxu0
      %v841 = vadd.f32 %v636, %v840
      %v842 = vpop.f32.mrf.mxu0
      %843 = vmatprep.mubr.bf16.mxu0 0
      %844 = vmatmul.mubr.bf16.gmra.mxu0 %v685
      %v845 = vpop.f32.mrf.mxu0
      %v846 = vadd.f32 %v636, %v845
      %v847 = vpop.f32.mrf.mxu0
      %v848 = vpop.f32.mrf.mxu0
      %v849 = vadd.f32 %v636, %v848
      %v850 = vpop.f32.mrf.mxu0
      %851 = vdwg.mxu0
      %852 = vst [vmem:[%s226] sm:$0xff] %v726
      %853 = vst [vmem:[%s226 + $0x8] sm:$0xff] %v729
      %854 = vst [vmem:[%s226 + $0x10] sm:$0xff] %v734
      %855 = vst [vmem:[%s226 + $0x18] sm:$0xff] %v737
      %856 = vst [vmem:[%s226 + $0x20] sm:$0xff] %v742
      %857 = vst [vmem:[%s226 + $0x28] sm:$0xff] %v745
      %858 = vst [vmem:[%s226 + $0x30] sm:$0xff] %v750
      %859 = vst [vmem:[%s226 + $0x38] sm:$0xff] %v753
      %860 = vst [vmem:[%s226 + $0x40] sm:$0xff] %v758
      %861 = vst [vmem:[%s226 + $0x48] sm:$0xff] %v761
      %862 = vst [vmem:[%s226 + $0x50] sm:$0xff] %v766
      %863 = vst [vmem:[%s226 + $0x58] sm:$0xff] %v769
      %864 = vst [vmem:[%s226 + $0x60] sm:$0xff] %v774
      %865 = vst [vmem:[%s226 + $0x68] sm:$0xff] %v777
      %866 = vst [vmem:[%s226 + $0x70] sm:$0xff] %v782
      %867 = vst [vmem:[%s226 + $0x78] sm:$0xff] %v785
      %868 = vst [vmem:[%s226 + $0x80] sm:$0xff] %v790
      %869 = vst [vmem:[%s226 + $0x88] sm:$0xff] %v793
      %870 = vst [vmem:[%s226 + $0x90] sm:$0xff] %v798
      %871 = vst [vmem:[%s226 + $0x98] sm:$0xff] %v801
      %872 = vst [vmem:[%s226 + $0xa0] sm:$0xff] %v806
      %873 = vst [vmem:[%s226 + $0xa8] sm:$0xff] %v809
      %874 = vst [vmem:[%s226 + $0xb0] sm:$0xff] %v814
      %875 = vst [vmem:[%s226 + $0xb8] sm:$0xff] %v817
      %876 = vst [vmem:[%s226 + $0xc0] sm:$0xff] %v822
      %877 = vst [vmem:[%s226 + $0xc8] sm:$0xff] %v825
      %878 = vst [vmem:[%s226 + $0xd0] sm:$0xff] %v830
      %879 = vst [vmem:[%s226 + $0xd8] sm:$0xff] %v833
      %880 = vst [vmem:[%s226 + $0xe0] sm:$0xff] %v838
      %881 = vst [vmem:[%s226 + $0xe8] sm:$0xff] %v841
      %882 = vst [vmem:[%s226 + $0xf0] sm:$0xff] %v846
      %883 = vst [vmem:[%s226 + $0xf8] sm:$0xff] %v849
      %s884 = smul.u32 32, %s16
      %p885 = scmp.lt.s32.totalorder %s884, 63
      %s886 = scalar_select %p885, %s884, 63
      %s887 = smul.addr %s886, 8
      %s888 = scalar_lea.vmem %s5, %s887
      // Predicated region
      $region41: #{_rpn_forward_core.2} parent=39 // pred_check
        %p889 = pneg %p144
      $region42: #{_rpn_forward_core.2} parent=39 // pred_check_branch
        %891 = sbr.rel (%p889) target = $region44
      $region43: #{_rpn_forward_core.2} parent=39 // pred_region
        %s892 = smul.u32 32, %s16
      $region44: #{_rpn_forward_core.2} parent=39 // pred_fallthru
        _
    $region40: #{_rpn_forward_core.2} parent=5 // pred_fallthru
      _
    %p893 = scmp.le.s32.totalorder 2, %s11
    // Predicated region
    $region45: #{_rpn_forward_core.2} parent=5 // pred_check
      %p894 = pneg %p893
    $region46: #{_rpn_forward_core.2} parent=5 // pred_check_branch
      %896 = sbr.rel (%p894) target = $region48
    $region47: #{_rpn_forward_core.2} parent=5 // pred_region
      %s897 = ssub.s32 %s11, 2
      // Predicated region
      $region49: #{_rpn_forward_core.2} parent=47 // pred_check
        %p898 = pneg %p150
      $region50: #{_rpn_forward_core.2} parent=47 // pred_check_branch
        %900 = sbr.rel (%p898) target = $region52
      $region51: #{_rpn_forward_core.2} parent=47 // pred_region
        %s901 = smul.u32 32, %s17
        %p902 = scmp.lt.s32.totalorder %s901, 63
        %s903 = scalar_select %p902, %s901, 63
        %s904 = smul.addr %s903, 8
        %s905 = scalar_lea.vmem %s5, %s904
      $region52: #{_rpn_forward_core.2} parent=47 // pred_fallthru
        _
    $region48: #{_rpn_forward_core.2} parent=5 // pred_fallthru
      _
  $region6: #{_rpn_forward_core.2} parent=0 // loop_footer
    %s15 = sadd.s32 1, %s11
  $region7: #{_rpn_forward_core.2} parent=0 // loop_footer_branch
    %10 = sbr.rel target = $region3
  $region8: #{_rpn_forward_core.2} parent=0 // loop_exit
    _

// kernel: _rpn_forward_core.3
$region0: #{_rpn_forward_core.3}
  #allocation0 [shape = 'u32[]', space=smem, size = 0x4, offset = 0x4, fixed_abs, tag = 'smem constant byte address 0x4 - core index']
  #allocation1 [shape = 'u32[144,128]{1,0:T(1,128)}', space=vmem, size = 0x12000, scoped, tag = 'internal scratch']
  #allocation2 [shape = 's32[1]{0}', space=sflag, size = 0x4, scoped, tag = 'scoped memory for _rpn_forward_core.3']
  #allocation3 [shape = 'u8[1024]{0}', space=smem, size = 0x400, scoped, tag = 'prefetched SMEM operand 0']
  %s0 = inlined_call_operand.vmem [shape: s32[2,2], index: 0, kind: input, shape index: {}]
  %s1 = inlined_call_operand.vmem [shape: f32[2,1,256], index: 1, kind: input, shape index: {}]
  %s2 = inlined_call_operand.vmem [shape: f32[2,4,256], index: 2, kind: input, shape index: {}]
  %s3 = inlined_call_operand.vmem [shape: f32[2,4,256], index: 3, kind: input, shape index: {}]
  %s4 = inlined_call_operand.vmem [shape: f32[2,1,256], index: 4, kind: output, shape index: {0}]
  %s5 = inlined_call_operand.vmem [shape: f32[2,4,256], index: 5, kind: output, shape index: {1}]
  %6 = xla_tuple %s4, %s5
  %s7 = sld [smem:[#allocation0]]
  $region53: #{_rpn_forward_core.3} parent=0
    _
  %s9 = ssub.s32 1, %s7
  %s10 = scalar_select 0, %s9, %s7
  %s11 = sshll.u32 %s0, 4
  %s12 = int_to_ptr.vmem [resolvable:$true] %s11
  %14 = dma.vmem_to_smem %s12, 32, [#allocation3], [#allocation2]
  %15 = dma.done [#allocation2], 32
  %16 = sfence
  loop: start=0, step=1, limit=4
  $region2: #{_rpn_forward_core.3} parent=0 // loop_pre_header
    _
  $region3: #{_rpn_forward_core.3} parent=0 // loop_header
    %s18 = sphi 0, %s22
    %p19 = scmp.ge.s32.totalorder %s18, 4
    %s28 = sphi 0, %s30
    %s31 = sphi 0, %s28
    %s32 = sphi 0, %s31
    %s48 = sphi 0, %s32
    %s54 = sphi 0, %s56
    %s57 = sphi 0, %s54
    %s58 = sphi 0, %s57
    %s74 = sphi 0, %s58
    %s80 = sphi 0, %s82
    %s83 = sphi 0, %s80
    %s84 = sphi 0, %s83
    %s100 = sphi 0, %s84
    %s106 = sphi 0, %s108
    %s109 = sphi 0, %s106
    %s110 = sphi 0, %s109
    %s126 = sphi 0, %s110
    %s132 = sphi 0, %s134
    %s135 = sphi 0, %s132
    %s136 = sphi 0, %s135
    %s152 = sphi 0, %s136
  $region4: #{_rpn_forward_core.3} parent=0 // loop_header_branch
    %21 = sbr.rel (%p19) target = $region8
  $region5: #{_rpn_forward_core.3} parent=0 // loop_body
    %s23 = ssub.s32 %s18, 1
    %s24 = ssub.s32 %s18, 2
    %s25 = sadd.s32 %s18, 1
    %s26 = ssub.s32 %s18, %s25
    %p27 = scmp.eq.s32.totalorder %s26, 0
    %s29 = sadd.s32 %s28, 1
    %s30 = scalar_select %p27, %s28, %s29
    %p33 = pneg %p27
    %p34 = scmp.eq.s32.totalorder %s18, 1
    %p35 = por %p33, %p34
    %p36 = scmp.ne.s32.totalorder %s28, %s31
    %p37 = scmp.eq.s32.totalorder %s18, 0
    %p38 = por %p36, %p37
    %p39 = scmp.ne.s32.totalorder %s28, %s31
    %p40 = scmp.eq.s32.totalorder %s23, 1
    %p41 = por %p39, %p40
    %p42 = scmp.ne.s32.totalorder %s31, %s32
    %p43 = scmp.eq.s32.totalorder %s23, 0
    %p44 = por %p42, %p43
    %p45 = scmp.ne.s32.totalorder %s31, %s32
    %p46 = scmp.eq.s32.totalorder %s24, 1
    %p47 = por %p45, %p46
    %p49 = scmp.ne.s32.totalorder %s32, %s48
    %p50 = scmp.eq.s32.totalorder %s24, 0
    %p51 = por %p49, %p50
    %s52 = ssub.s32 %s18, %s25
    %p53 = scmp.eq.s32.totalorder %s52, 0
    %s55 = sadd.s32 %s54, 1
    %s56 = scalar_select %p53, %s54, %s55
    %p59 = pneg %p53
    %p60 = scmp.eq.s32.totalorder %s18, 1
    %p61 = por %p59, %p60
    %p62 = scmp.ne.s32.totalorder %s54, %s57
    %p63 = scmp.eq.s32.totalorder %s18, 0
    %p64 = por %p62, %p63
    %p65 = scmp.ne.s32.totalorder %s54, %s57
    %p66 = scmp.eq.s32.totalorder %s23, 1
    %p67 = por %p65, %p66
    %p68 = scmp.ne.s32.totalorder %s57, %s58
    %p69 = scmp.eq.s32.totalorder %s23, 0
    %p70 = por %p68, %p69
    %p71 = scmp.ne.s32.totalorder %s57, %s58
    %p72 = scmp.eq.s32.totalorder %s24, 1
    %p73 = por %p71, %p72
    %p75 = scmp.ne.s32.totalorder %s58, %s74
    %p76 = scmp.eq.s32.totalorder %s24, 0
    %p77 = por %p75, %p76
    %s78 = ssub.s32 %s18, %s25
    %p79 = scmp.eq.s32.totalorder %s78, 0
    %s81 = sadd.s32 %s80, 1
    %s82 = scalar_select %p79, %s80, %s81
    %p85 = pneg %p79
    %p86 = scmp.eq.s32.totalorder %s18, 1
    %p87 = por %p85, %p86
    %p88 = scmp.ne.s32.totalorder %s80, %s83
    %p89 = scmp.eq.s32.totalorder %s18, 0
    %p90 = por %p88, %p89
    %p91 = scmp.ne.s32.totalorder %s80, %s83
    %p92 = scmp.eq.s32.totalorder %s23, 1
    %p93 = por %p91, %p92
    %p94 = scmp.ne.s32.totalorder %s83, %s84
    %p95 = scmp.eq.s32.totalorder %s23, 0
    %p96 = por %p94, %p95
    %p97 = scmp.ne.s32.totalorder %s83, %s84
    %p98 = scmp.eq.s32.totalorder %s24, 1
    %p99 = por %p97, %p98
    %p101 = scmp.ne.s32.totalorder %s84, %s100
    %p102 = scmp.eq.s32.totalorder %s24, 0
    %p103 = por %p101, %p102
    %s104 = ssub.s32 %s18, %s25
    %p105 = scmp.eq.s32.totalorder %s104, 0
    %s107 = sadd.s32 %s106, 1
    %s108 = scalar_select %p105, %s106, %s107
    %p111 = pneg %p105
    %p112 = scmp.eq.s32.totalorder %s18, 1
    %p113 = por %p111, %p112
    %p114 = scmp.ne.s32.totalorder %s106, %s109
    %p115 = scmp.eq.s32.totalorder %s18, 0
    %p116 = por %p114, %p115
    %p117 = scmp.ne.s32.totalorder %s106, %s109
    %p118 = scmp.eq.s32.totalorder %s23, 1
    %p119 = por %p117, %p118
    %p120 = scmp.ne.s32.totalorder %s109, %s110
    %p121 = scmp.eq.s32.totalorder %s23, 0
    %p122 = por %p120, %p121
    %p123 = scmp.ne.s32.totalorder %s109, %s110
    %p124 = scmp.eq.s32.totalorder %s24, 1
    %p125 = por %p123, %p124
    %p127 = scmp.ne.s32.totalorder %s110, %s126
    %p128 = scmp.eq.s32.totalorder %s24, 0
    %p129 = por %p127, %p128
    %s130 = ssub.s32 %s18, %s25
    %p131 = scmp.eq.s32.totalorder %s130, 0
    %s133 = sadd.s32 %s132, 1
    %s134 = scalar_select %p131, %s132, %s133
    %p137 = pneg %p131
    %p138 = scmp.eq.s32.totalorder %s18, 1
    %p139 = por %p137, %p138
    %p140 = scmp.ne.s32.totalorder %s132, %s135
    %p141 = scmp.eq.s32.totalorder %s18, 0
    %p142 = por %p140, %p141
    %p143 = scmp.ne.s32.totalorder %s132, %s135
    %p144 = scmp.eq.s32.totalorder %s23, 1
    %p145 = por %p143, %p144
    %p146 = scmp.ne.s32.totalorder %s135, %s136
    %p147 = scmp.eq.s32.totalorder %s23, 0
    %p148 = por %p146, %p147
    %p149 = scmp.ne.s32.totalorder %s135, %s136
    %p150 = scmp.eq.s32.totalorder %s24, 1
    %p151 = por %p149, %p150
    %p153 = scmp.ne.s32.totalorder %s136, %s152
    %p154 = scmp.eq.s32.totalorder %s24, 0
    %p155 = por %p153, %p154
    %p156 = scmp.le.s32.totalorder 1, %s18
    %p157 = scmp.lt.s32.totalorder %s18, 3
    %p158 = pnand %p156, %p157
    %p159 = pneg %p158
    // Predicated region
    $region9: #{_rpn_forward_core.3} parent=5 // pred_check
      _
    $region10: #{_rpn_forward_core.3} parent=5 // pred_check_branch
      %161 = sbr.rel (%p158) target = $region12
    $region11: #{_rpn_forward_core.3} parent=5 // pred_region
      %s162 = ssub.s32 %s18, 1
    $region12: #{_rpn_forward_core.3} parent=5 // pred_fallthru
      _
    %p163 = scmp.lt.s32.totalorder %s18, 2
    // Predicated region
    $region13: #{_rpn_forward_core.3} parent=5 // pred_check
      %p164 = pneg %p163
    $region14: #{_rpn_forward_core.3} parent=5 // pred_check_branch
      %166 = sbr.rel (%p164) target = $region16
    $region15: #{_rpn_forward_core.3} parent=5 // pred_region
      // Predicated region
      $region17: #{_rpn_forward_core.3} parent=15 // pred_check
        %p167 = pneg %p38
      $region18: #{_rpn_forward_core.3} parent=15 // pred_check_branch
        %169 = sbr.rel (%p167) target = $region20
      $region19: #{_rpn_forward_core.3} parent=15 // pred_region
        %p170 = scmp.lt.s32.totalorder %s18, 1
        %s171 = scalar_select %p170, %s18, 1
        %s172 = smul.addr %s171, 2
        %s173 = scalar_lea.vmem %s1, %s172
      $region20: #{_rpn_forward_core.3} parent=15 // pred_fallthru
        _
      // Predicated region
      $region21: #{_rpn_forward_core.3} parent=15 // pred_check
        %p174 = pneg %p64
      $region22: #{_rpn_forward_core.3} parent=15 // pred_check_branch
        %176 = sbr.rel (%p174) target = $region24
      $region23: #{_rpn_forward_core.3} parent=15 // pred_region
        %p177 = scmp.lt.s32.totalorder %s18, 1
        %s178 = scalar_select %p177, %s18, 1
        %s179 = smul.addr %s178, 2
        %s180 = smul.addr %s179, 4
        %s181 = scalar_lea.vmem %s2, %s180
      $region24: #{_rpn_forward_core.3} parent=15 // pred_fallthru
        _
      // Predicated region
      $region25: #{_rpn_forward_core.3} parent=15 // pred_check
        %p182 = pneg %p90
      $region26: #{_rpn_forward_core.3} parent=15 // pred_check_branch
        %184 = sbr.rel (%p182) target = $region28
      $region27: #{_rpn_forward_core.3} parent=15 // pred_region
        %p185 = scmp.lt.s32.totalorder %s18, 1
        %s186 = scalar_select %p185, %s18, 1
        %s187 = smul.addr %s186, 2
        %s188 = smul.addr %s187, 4
        %s189 = scalar_lea.vmem %s3, %s188
      $region28: #{_rpn_forward_core.3} parent=15 // pred_fallthru
        _
    $region16: #{_rpn_forward_core.3} parent=5 // pred_fallthru
      _
    %p190 = scmp.le.s32.totalorder 1, %s18
    %p191 = scmp.lt.s32.totalorder %s18, 3
    %p192 = pnand %p190, %p191
    %p193 = pneg %p192
    // Predicated region
    $region29: #{_rpn_forward_core.3} parent=5 // pred_check
      _
    $region30: #{_rpn_forward_core.3} parent=5 // pred_check_branch
      %195 = sbr.rel (%p192) target = $region32
    $region31: #{_rpn_forward_core.3} parent=5 // pred_region
      %s196 = ssub.s32 %s18, 1
      %p197 = scmp.lt.s32.totalorder %s23, 1
      %s198 = scalar_select %p197, %s23, 1
      %s199 = smul.addr %s198, 2
      %s200 = scalar_lea.vmem %s1, %s199
      %p201 = pneg %p44
      %p202 = pneg %p41
      %p203 = scmp.lt.s32.totalorder %s23, 1
      %s204 = scalar_select %p203, %s23, 1
      %s205 = smul.addr %s204, 2
      %s206 = smul.addr %s205, 4
      %s207 = scalar_lea.vmem %s2, %s206
      %p208 = pneg %p70
      %p209 = pneg %p67
      %p210 = scmp.lt.s32.totalorder %s23, 1
      %s211 = scalar_select %p210, %s23, 1
      %s212 = smul.addr %s211, 2
      %s213 = smul.addr %s212, 4
      %s214 = scalar_lea.vmem %s3, %s213
      %p215 = pneg %p96
      %p216 = pneg %p93
      %p217 = pneg %p122
      %p218 = pneg %p119
      %p219 = scmp.lt.s32.totalorder %s23, 1
      %s220 = scalar_select %p219, %s23, 1
      %s221 = smul.addr %s220, 2
      %s222 = scalar_lea.vmem %s4, %s221
      %p223 = pneg %p148
      %p224 = pneg %p145
      %p225 = scmp.lt.s32.totalorder %s23, 1
      %s226 = scalar_select %p225, %s23, 1
      %s227 = smul.addr %s226, 2
      %s228 = smul.addr %s227, 4
      %s229 = scalar_lea.vmem %s5, %s228
      %p230 = scmp.lt.s32.totalorder %s23, 1
      %s231 = scalar_select %p230, %s23, 1
      %s232 = smul.addr %s231, 2
      %s233 = scalar_lea.vmem %s1, %s232
      %p234 = scmp.lt.s32.totalorder %s23, 1
      %s235 = scalar_select %p234, %s23, 1
      %s236 = smul.addr %s235, 2
      %s237 = smul.addr %s236, 4
      %s238 = scalar_lea.vmem %s2, %s237
      %p239 = scmp.lt.s32.totalorder %s23, 1
      %s240 = scalar_select %p239, %s23, 1
      %s241 = smul.addr %s240, 2
      %s242 = smul.addr %s241, 4
      %s243 = scalar_lea.vmem %s3, %s242
      %p244 = scmp.lt.s32.totalorder %s23, 1
      %s245 = scalar_select %p244, %s23, 1
      %s246 = smul.addr %s245, 2
      %s247 = scalar_lea.vmem %s4, %s246
      %p248 = scmp.lt.s32.totalorder %s23, 1
      %s249 = scalar_select %p248, %s23, 1
      %s250 = smul.addr %s249, 2
      %s251 = smul.addr %s250, 4
      %s252 = scalar_lea.vmem %s5, %s251
      %s253 = smul.u32 %s23, 128
      %s254 = sld [smem:[#allocation3 + %s253]]
      %s255 = scvt.s32.f32 %s254
      %s256 = sadd.s32 %s253, 1
      %s257 = sld [smem:[#allocation3 + %s256]]
      %s258 = scvt.s32.f32 %s257
      %v259 = vld [vmem:[%s233] sm:$0x3]
      %v260 = vand.u32 2147483647, %v259
      %v261 = vsub.f32 0.0, %v260
      %v262 = vmul.f32 %v261, 1.442695
      %v263 = vpow.pop %v262
      %vm264 = vcmp.ge.f32.partialorder %v259, 0.0
      %v265 = vsel %vm264, 1.0, %v263
      %v266 = vadd.f32 %v263, 1.0
      %v267 = vrcp.pop %v266
      %v268 = vmul.f32 %v265, %v267
      %v269 = vlaneseq
      %vm270 = vcmp.ge.s32.totalorder %v269, 0
      %vm271 = vcmp.lt.s32.totalorder %v269, 256
      %vm272 = vmand %vm270, %vm271
      %273 = vst.msk [vmem:[%s247] sm:$0x3] %vm272, %v268
      %v274 = vld [vmem:[%s243] sm:$0xff]
      %v275 = vld [vmem:[%s238] sm:$0xff]
      %v277 = vrot.slane %v274, 6
      %v279 = vsub.f32 %v274, %v277
      %v280 = vmul.f32 %v279, 0.5
      %v282 = vrot.slane %v280, 6
      %v283 = vrot.slane %v282, 4
      %v285 = vadd.f32 %v274, %v283
      %v286 = vmin.f32 %v275, 4.1351666
      %v288 = vrot.slane %v279, 6
      %v289 = vrot.slane %v288, 4
      %v291 = vmul.f32 %v275, %v289
      %v292 = vadd.f32 %v291, %v285
      %v293 = vmul.f32 %v286, 1.442695
      %v294 = vpow.pop %v293
      %v295 = vmul.f32 %v294, %v279
      %v296 = vmul.f32 %v295, 0.5
      %v298 = vrot.slane %v296, 6
      %v299 = vrot.slane %v298, 4
      %v301 = vsub.f32 %v292, %v299
      %v302 = vmax.f32 %v301, 0.0
      %v303 = vstv %s255
      %v304 = vmin.f32 %v303, %v302
      %v307 = vunpack.c.l.s4 1966171168
      %v308 = vunpack.c.0.s8 %v307
      %v309 = vlaneseq
      %v310 = vshrl.u32 %v309, 7
      %v311 = vsub.s32 %v308, %v310
      %v312 = vrot.slane %v304, %v311
      %v314 = vunpack.c.l.s4 1966171168
      %v315 = vunpack.c.0.s8 %v314
      %v316 = vlaneseq
      %v317 = vshrl.u32 %v316, 7
      %v318 = vsub.s32 %v315, %v317
      %v319 = vrot.slane %v312, %v318
      %321 = vst.msk [vmem:[%s252] ss:$4 sm:$0x3] %vm272, %v319
      %v322 = vstv %s258
      %v323 = vmin.f32 %v322, %v302
      %v326 = vunpack.c.l.s4 1966171168
      %v327 = vunpack.c.0.s8 %v326
      %v328 = vlaneseq
      %v329 = vshrl.u32 %v328, 7
      %v330 = vsub.s32 %v327, %v329
      %v331 = vrot.slane %v323, %v330
      %v332 = vcombine.high %v331, %v331
      %v334 = vunpack.c.l.s4 1966171168
      %v335 = vunpack.c.0.s8 %v334
      %v336 = vlaneseq
      %v337 = vshrl.u32 %v336, 7
      %v338 = vsub.s32 %v335, %v337
      %v339 = vrot.slane %v332, %v338
      %s341 = scalar_lea.vmem %s252, 1
      %342 = vst.msk [vmem:[%s341] ss:$4 sm:$0x3] %vm272, %v339
      %v343 = vadd.f32 %v292, %v299
      %v344 = vmax.f32 %v343, 0.0
      %v345 = vmin.f32 %v303, %v344
      %v348 = vunpack.c.l.s4 1966171168
      %v349 = vunpack.c.0.s8 %v348
      %v350 = vlaneseq
      %v351 = vshrl.u32 %v350, 7
      %v352 = vsub.s32 %v349, %v351
      %v353 = vrot.slane %v345, %v352
      %v355 = vunpack.c.l.s4 1966171168
      %v356 = vunpack.c.0.s8 %v355
      %v357 = vlaneseq
      %v358 = vshrl.u32 %v357, 7
      %v359 = vsub.s32 %v356, %v358
      %v360 = vrot.slane %v353, %v359
      %s362 = scalar_lea.vmem %s252, 2
      %363 = vst.msk [vmem:[%s362] ss:$4 sm:$0x3] %vm272, %v360
      %v364 = vmin.f32 %v322, %v344
      %v367 = vunpack.c.l.s4 1966171168
      %v368 = vunpack.c.0.s8 %v367
      %v369 = vlaneseq
      %v370 = vshrl.u32 %v369, 7
      %v371 = vsub.s32 %v368, %v370
      %v372 = vrot.slane %v364, %v371
      %v373 = vcombine.high %v372, %v372
      %v375 = vunpack.c.l.s4 1966171168
      %v376 = vunpack.c.0.s8 %v375
      %v377 = vlaneseq
      %v378 = vshrl.u32 %v377, 7
      %v379 = vsub.s32 %v376, %v378
      %v380 = vrot.slane %v373, %v379
      %s382 = scalar_lea.vmem %s252, 3
      %383 = vst.msk [vmem:[%s382] ss:$4 sm:$0x3] %vm272, %v380
      %p384 = scmp.lt.s32.totalorder %s23, 1
      %s385 = scalar_select %p384, %s23, 1
      %s386 = smul.addr %s385, 2
      %s387 = scalar_lea.vmem %s4, %s386
      %p388 = scmp.lt.s32.totalorder %s23, 1
      %s389 = scalar_select %p388, %s23, 1
      %s390 = smul.addr %s389, 2
      %s391 = smul.addr %s390, 4
      %s392 = scalar_lea.vmem %s5, %s391
      // Predicated region
      $region33: #{_rpn_forward_core.3} parent=31 // pred_check
        %p393 = pneg %p119
      $region34: #{_rpn_forward_core.3} parent=31 // pred_check_branch
        %395 = sbr.rel (%p393) target = $region36
      $region35: #{_rpn_forward_core.3} parent=31 // pred_region
        _
      $region36: #{_rpn_forward_core.3} parent=31 // pred_fallthru
        _
      // Predicated region
      $region37: #{_rpn_forward_core.3} parent=31 // pred_check
        %p396 = pneg %p145
      $region38: #{_rpn_forward_core.3} parent=31 // pred_check_branch
        %398 = sbr.rel (%p396) target = $region40
      $region39: #{_rpn_forward_core.3} parent=31 // pred_region
        _
      $region40: #{_rpn_forward_core.3} parent=31 // pred_fallthru
        _
    $region32: #{_rpn_forward_core.3} parent=5 // pred_fallthru
      _
    %p399 = scmp.le.s32.totalorder 2, %s18
    // Predicated region
    $region41: #{_rpn_forward_core.3} parent=5 // pred_check
      %p400 = pneg %p399
    $region42: #{_rpn_forward_core.3} parent=5 // pred_check_branch
      %402 = sbr.rel (%p400) target = $region44
    $region43: #{_rpn_forward_core.3} parent=5 // pred_region
      %s403 = ssub.s32 %s18, 2
      // Predicated region
      $region45: #{_rpn_forward_core.3} parent=43 // pred_check
        %p404 = pneg %p125
      $region46: #{_rpn_forward_core.3} parent=43 // pred_check_branch
        %406 = sbr.rel (%p404) target = $region48
      $region47: #{_rpn_forward_core.3} parent=43 // pred_region
        %p407 = scmp.lt.s32.totalorder %s24, 1
        %s408 = scalar_select %p407, %s24, 1
        %s409 = smul.addr %s408, 2
        %s410 = scalar_lea.vmem %s4, %s409
      $region48: #{_rpn_forward_core.3} parent=43 // pred_fallthru
        _
      // Predicated region
      $region49: #{_rpn_forward_core.3} parent=43 // pred_check
        %p411 = pneg %p151
      $region50: #{_rpn_forward_core.3} parent=43 // pred_check_branch
        %413 = sbr.rel (%p411) target = $region52
      $region51: #{_rpn_forward_core.3} parent=43 // pred_region
        %p414 = scmp.lt.s32.totalorder %s24, 1
        %s415 = scalar_select %p414, %s24, 1
        %s416 = smul.addr %s415, 2
        %s417 = smul.addr %s416, 4
        %s418 = scalar_lea.vmem %s5, %s417
      $region52: #{_rpn_forward_core.3} parent=43 // pred_fallthru
        _
    $region44: #{_rpn_forward_core.3} parent=5 // pred_fallthru
      _
  $region6: #{_rpn_forward_core.3} parent=0 // loop_footer
    %s22 = sadd.s32 1, %s18
  $region7: #{_rpn_forward_core.3} parent=0 // loop_footer_branch
    %17 = sbr.rel target = $region3
  $region8: #{_rpn_forward_core.3} parent=0 // loop_exit
    _

</llo_original>
